<compile_context>
chip_gen: v7x
topology: tpu7x:2x2x1
jax: 0.10.0
libtpu: 0.0.40
codegen_flags: <defaults>
</compile_context>

<pallas_src>
import functools

import jax
import jax.numpy as jnp
import numpy as np
from jax import lax
from jax.experimental import pallas as pl
from jax.experimental.pallas import tpu as pltpu


# ----------------------------- Pallas kernel -----------------------------

def memory_kernel(k_ref, u_ref, ku_ref, mk_ref, mu_ref,
                  w1_ref, b1_ref, w2_ref, b2_ref,
                  out_ref, mk_out_ref, mu_out_ref,
                  umem_ref,
                  *, lr, decay, write_temp, dk, du):
    B, T, _ = k_ref.shape
    inv_wt = 1.0 / write_temp
    keep = 1.0 - decay

    def body(i, carry):
        mem_k, mem_u = carry                                # (Dk, S), (Du, S)
        k_task = k_ref[i]                                   # (T, Dk)
        ku_task = ku_ref[i]                                 # (T, Dk+Du)

        # Cosine similarity: rsqrt + multiply (no sqrt/divide on the carried chain).
        k_inv = lax.rsqrt(jnp.sum(k_task * k_task, axis=-1, keepdims=True))   # (T, 1)
        m_inv = lax.rsqrt(jnp.sum(mem_k * mem_k, axis=0, keepdims=True))      # (1, S)
        sim = jnp.dot(k_task, mem_k, preferred_element_type=jnp.float32)
        sim = sim * (k_inv * m_inv)                                            # (T, S)

        # Shared shifted logits for both softmaxes (write_temp > 0 => same row max).
        r = sim - jnp.max(sim, axis=-1, keepdims=True)
        p = jnp.exp(r)
        read_w = p / jnp.sum(p, axis=-1, keepdims=True)                        # (T, S)
        pw = jnp.exp(r * inv_wt)
        write_w = pw / jnp.sum(pw, axis=-1, keepdims=True)                     # (T, S)

        # Read path (off the carried chain): stash u_mem; the MLP runs after the loop.
        u_mem = lax.dot_general(read_w, mem_u, (((1,), (1,)), ((), ())),
                                preferred_element_type=jnp.float32)            # (T, Du)
        row = pl.multiple_of(i * T, T)
        umem_ref[pl.ds(row, T), :] = u_mem

        # Write path: one fused MXU pass gives both memory updates.
        upd = lax.dot_general(ku_task, write_w, (((0,), (0,)), ((), ())),
                              preferred_element_type=jnp.float32)              # (Dk+Du, S)
        new_k = keep * mem_k + lr * upd[0:dk, :]                               # (Dk, S)
        new_u = keep * mem_u + lr * upd[dk:dk + du, :]                         # (Du, S)

        # Conditional column renormalization (F.normalize(dim=0), eps=1e-12);
        # Frobenius gate reuses the column sum-of-squares (fro > 2  <=>  fro^2 > 4).
        col_k_sq = jnp.sum(new_k * new_k, axis=0, keepdims=True)               # (1, S)
        col_u_sq = jnp.sum(new_u * new_u, axis=0, keepdims=True)               # (1, S)
        do_norm = jnp.sum(col_k_sq) > 4.0
        nk = new_k * lax.rsqrt(jnp.maximum(col_k_sq, 1e-24))
        nu = new_u * lax.rsqrt(jnp.maximum(col_u_sq, 1e-24))
        new_k = jnp.where(do_norm, nk, new_k)
        new_u = jnp.where(do_norm, nu, new_u)
        return new_k, new_u

    # Sequential dependency across tasks -> carried loop; small static trip count -> unroll.
    mem_k, mem_u = lax.fori_loop(0, B, body, (mk_ref[...], mu_ref[...]), unroll=True)

    mk_out_ref[...] = mem_k.astype(mk_out_ref.dtype)
    mu_out_ref[...] = mem_u.astype(mu_out_ref.dtype)

    # --- understanding combiner, hoisted out of the loop: one batched MLP over B*T rows ---
    # cat([u, u_mem], -1) @ W1 == u @ W1[:Du] + u_mem @ W1[Du:] (sublane-aligned weight split).
    w1a = w1_ref[0:du, :]                                   # (Du, Du)
    w1b = w1_ref[du:2 * du, :]                              # (Du, Du)
    u_flat = u_ref[...]                                     # (B*T, Du)
    u_mem_flat = umem_ref[...]                              # (B*T, Du)
    h = jnp.dot(u_flat, w1a, preferred_element_type=jnp.float32)
    h = h + jnp.dot(u_mem_flat, w1b, preferred_element_type=jnp.float32) + b1_ref[...]
    h = jnp.maximum(h, 0.0)
    refined = jnp.dot(h, w2_ref[...], preferred_element_type=jnp.float32) + b2_ref[...]
    out_ref[...] = refined.astype(out_ref.dtype)


# ----------------------------- host-side wrapper -----------------------------

def memory_pallas(k, u, mem_k, mem_u, w1, b1, w2, b2, *, lr, decay, write_temp):
    B, T, Dk = k.shape
    Du = u.shape[-1]
    S = mem_k.shape[-1]

    # One-time XLA-side layout plumbing (outside the kernel):
    #  - flattened u for the hoisted batched MLP,
    #  - fused [k|u] for the single write-path dot_general.
    u_flat = u.reshape(B * T, Du)
    ku = jnp.concatenate([k, u], axis=-1)                   # (B, T, Dk+Du)

    kernel = functools.partial(memory_kernel, lr=float(lr), decay=float(decay),
                               write_temp=float(write_temp), dk=Dk, du=Du)

    vmem = pl.BlockSpec(memory_space=pltpu.MemorySpace.VMEM)
    out_flat, new_mk, new_mu = pl.pallas_call(
        kernel,
        out_shape=(
            jax.ShapeDtypeStruct((B * T, Du), u.dtype),      # u_refined (flat)
            jax.ShapeDtypeStruct((Dk, S), mem_k.dtype),      # updated memory_knowledge
            jax.ShapeDtypeStruct((Du, S), mem_u.dtype),      # updated memory_understanding
        ),
        in_specs=[vmem] * 9,
        out_specs=(vmem, vmem, vmem),
        scratch_shapes=[pltpu.VMEM((B * T, Du), jnp.float32)],   # stashed u_mem rows
    )(k, u_flat, ku, mem_k, mem_u, w1, b1, w2, b2)

    return out_flat.reshape(B, T, Du), new_mk, new_mu


# ----------------------------- pure-JAX reference -----------------------------

def memory_ref(k, u, mem_k, mem_u, w1, b1, w2, b2, *, lr, decay, write_temp):
    outs = []
    for i in range(k.shape[0]):
        k_task, u_task = k[i], u[i]
        k_norm = jnp.linalg.norm(k_task, axis=-1, keepdims=True)
        m_norm = jnp.linalg.norm(mem_k, axis=0, keepdims=True)
        sim = (k_task @ mem_k) / (k_norm * m_norm)
        read_w = jax.nn.softmax(sim, axis=-1)
        u_mem = read_w @ mem_u.T
        cat = jnp.concatenate([u_task, u_mem], axis=-1)
        refined = jax.nn.relu(cat @ w1 + b1) @ w2 + b2
        outs.append(refined)
        write_w = jax.nn.softmax(sim / write_temp, axis=-1)
        new_k = (1.0 - decay) * mem_k + lr * (k_task.T @ write_w)
        new_u = (1.0 - decay) * mem_u + lr * (u_task.T @ write_w)
        fro = jnp.linalg.norm(new_k)
        nk = new_k / jnp.maximum(jnp.linalg.norm(new_k, axis=0, keepdims=True), 1e-12)
        nu = new_u / jnp.maximum(jnp.linalg.norm(new_u, axis=0, keepdims=True), 1e-12)
        mem_k = jnp.where(fro > 2.0, nk, new_k)
        mem_u = jnp.where(fro > 2.0, nu, new_u)
    return jnp.stack(outs, axis=0), mem_k, mem_u


# ------------------------------------ main ------------------------------------

def _orthogonal(key, rows, cols):
    # Deterministic semi-orthogonal init (mimics nn.init.orthogonal_); not a checkpoint.
    a = jax.random.normal(key, (max(rows, cols), min(rows, cols)), jnp.float32)
    q, _ = jnp.linalg.qr(a)
    q = q if rows >= cols else q.T
    return q.astype(jnp.float32)


def _make_linear(key, din, dout):
    k1, k2 = jax.random.split(key)
    W = (jax.random.normal(k1, (din, dout), jnp.float32) / np.sqrt(din)).astype(jnp.float32)
    b = (0.01 * jax.random.normal(k2, (1, dout), jnp.float32)).astype(jnp.float32)
    return W, b


if __name__ == "__main__":
    # Small shapes consistent with the module.
    B, T = 2, 8                 # number of tasks, rows per task
    Dk = 16                     # knowledge_representation_dim
    Du = 32                     # understanding_representation_dim
    S = 32                      # memory_slots
    lr = 0.1                    # memory_learning_rate
    decay = 0.05                # memory_decay_rate
    write_temp = 0.5            # memory_write_temperature

    root = jax.random.PRNGKey(0)
    keys = jax.random.split(root, 8)

    k = jax.random.normal(keys[0], (B, T, Dk), jnp.float32)
    u = jax.random.normal(keys[1], (B, T, Du), jnp.float32)
    mem_k = _orthogonal(keys[2], Dk, S)     # (Dk, S)
    mem_u = _orthogonal(keys[3], Du, S)     # (Du, S)

    # understanding_combiner: Linear(2Du -> Du), ReLU, Linear(Du -> Du)
    # (weights passed pre-transposed as (in, out) so y = x @ W + b)
    w1, b1 = _make_linear(keys[4], 2 * Du, Du)
    w2, b2 = _make_linear(keys[5], Du, Du)

    out, new_mk, new_mu = memory_pallas(
        k, u, mem_k, mem_u, w1, b1, w2, b2,
        lr=lr, decay=decay, write_temp=write_temp)
    out = jax.block_until_ready(out)

    ref_out, ref_mk, ref_mu = memory_ref(
        k, u, mem_k, mem_u, w1, b1, w2, b2,
        lr=lr, decay=decay, write_temp=write_temp)
    jax.block_until_ready(ref_out)

    np.testing.assert_allclose(np.asarray(out), np.asarray(ref_out), rtol=1e-4, atol=1e-4)
    np.testing.assert_allclose(np.asarray(new_mk), np.asarray(ref_mk), rtol=1e-4, atol=1e-4)
    np.testing.assert_allclose(np.asarray(new_mu), np.asarray(ref_mu), rtol=1e-4, atol=1e-4)

    print("KERNEL_OK")
</pallas_src>

<mosaic_0001>
module attributes {stable_mosaic.version = 11 : i64} {
  func.func @memory_kernel(%arg0: memref<2x8x16xf32, #tpu.memory_space<vmem>>, %arg1: memref<16x32xf32, #tpu.memory_space<vmem>>, %arg2: memref<2x8x48xf32, #tpu.memory_space<vmem>>, %arg3: memref<16x32xf32, #tpu.memory_space<vmem>>, %arg4: memref<32x32xf32, #tpu.memory_space<vmem>>, %arg5: memref<64x32xf32, #tpu.memory_space<vmem>>, %arg6: memref<1x32xf32, #tpu.memory_space<vmem>>, %arg7: memref<32x32xf32, #tpu.memory_space<vmem>>, %arg8: memref<1x32xf32, #tpu.memory_space<vmem>>, %arg9: memref<16x32xf32, #tpu.memory_space<vmem>>, %arg10: memref<16x32xf32, #tpu.memory_space<vmem>>, %arg11: memref<32x32xf32, #tpu.memory_space<vmem>>, %arg12: memref<16x32xf32, #tpu.memory_space<vmem>>) attributes {dimension_semantics = [], scalar_prefetch = 0 : i64, scratch_operands = 1 : i64, tpu.core_type = #tpu.core_type<tc>} {
    %c0 = arith.constant 0 : index
    %c0_0 = arith.constant 0 : index
    %0 = vector.load %arg3[%c0, %c0_0] : memref<16x32xf32, #tpu.memory_space<vmem>>, vector<16x32xf32>
    %c0_1 = arith.constant 0 : index
    %c0_2 = arith.constant 0 : index
    %1 = vector.load %arg4[%c0_1, %c0_2] : memref<32x32xf32, #tpu.memory_space<vmem>>, vector<32x32xf32>
    %c0_i32 = arith.constant 0 : i32
    %2 = arith.index_cast %c0_i32 : i32 to index
    %c0_3 = arith.constant 0 : index
    %c0_4 = arith.constant 0 : index
    %3 = vector.load %arg0[%2, %c0_3, %c0_4] : memref<2x8x16xf32, #tpu.memory_space<vmem>>, vector<1x8x16xf32>
    %4 = vector.shape_cast %3 : vector<1x8x16xf32> to vector<8x16xf32>
    %5 = arith.index_cast %c0_i32 : i32 to index
    %c0_5 = arith.constant 0 : index
    %c0_6 = arith.constant 0 : index
    %6 = vector.load %arg2[%5, %c0_5, %c0_6] : memref<2x8x48xf32, #tpu.memory_space<vmem>>, vector<1x8x48xf32>
    %7 = vector.shape_cast %6 : vector<1x8x48xf32> to vector<8x48xf32>
    %8 = arith.mulf %4, %4 : vector<8x16xf32>
    %cst = arith.constant dense<0.000000e+00> : vector<8xf32>
    %9 = vector.multi_reduction <add>, %8, %cst [1] : vector<8x16xf32> to vector<8xf32>
    %10 = vector.shape_cast %9 : vector<8xf32> to vector<8x1xf32>
    %11 = math.rsqrt %10 : vector<8x1xf32>
    %12 = arith.mulf %0, %0 : vector<16x32xf32>
    %cst_7 = arith.constant dense<0.000000e+00> : vector<32xf32>
    %13 = vector.multi_reduction <add>, %12, %cst_7 [0] : vector<16x32xf32> to vector<32xf32>
    %14 = vector.shape_cast %13 : vector<32xf32> to vector<1x32xf32>
    %15 = math.rsqrt %14 : vector<1x32xf32>
    %cst_8 = arith.constant dense<0.000000e+00> : vector<8x32xf32>
    %16 = tpu.matmul %4, %0, %cst_8 {dimension_numbers = #tpu.dot_dimension_numbers<[1], [0], [0], [1], [0, 0, 1, 1], [], []>} : vector<8x16xf32>, vector<16x32xf32>, vector<8x32xf32> -> vector<8x32xf32>
    %17 = vector.broadcast %11 : vector<8x1xf32> to vector<8x32xf32>
    %18 = vector.broadcast %15 : vector<1x32xf32> to vector<8x32xf32>
    %19 = arith.mulf %17, %18 : vector<8x32xf32>
    %20 = arith.mulf %16, %19 : vector<8x32xf32>
    %cst_9 = arith.constant dense<0xFF800000> : vector<8xf32>
    %21 = vector.multi_reduction <maximumf>, %20, %cst_9 [1] : vector<8x32xf32> to vector<8xf32>
    %22 = vector.shape_cast %21 : vector<8xf32> to vector<8x1xf32>
    %23 = vector.broadcast %22 : vector<8x1xf32> to vector<8x32xf32>
    %24 = arith.subf %20, %23 : vector<8x32xf32>
    %25 = math.exp %24 : vector<8x32xf32>
    %cst_10 = arith.constant dense<0.000000e+00> : vector<8xf32>
    %26 = vector.multi_reduction <add>, %25, %cst_10 [1] : vector<8x32xf32> to vector<8xf32>
    %27 = vector.shape_cast %26 : vector<8xf32> to vector<8x1xf32>
    %28 = vector.broadcast %27 : vector<8x1xf32> to vector<8x32xf32>
    %29 = arith.divf %25, %28 : vector<8x32xf32>
    %cst_11 = arith.constant 2.000000e+00 : f32
    %30 = vector.broadcast %cst_11 : f32 to vector<8x32xf32>
    %31 = arith.mulf %24, %30 : vector<8x32xf32>
    %32 = math.exp %31 : vector<8x32xf32>
    %cst_12 = arith.constant dense<0.000000e+00> : vector<8xf32>
    %33 = vector.multi_reduction <add>, %32, %cst_12 [1] : vector<8x32xf32> to vector<8xf32>
    %34 = vector.shape_cast %33 : vector<8xf32> to vector<8x1xf32>
    %35 = vector.broadcast %34 : vector<8x1xf32> to vector<8x32xf32>
    %36 = arith.divf %32, %35 : vector<8x32xf32>
    %cst_13 = arith.constant dense<0.000000e+00> : vector<8x32xf32>
    %37 = tpu.matmul %29, %1, %cst_13 {dimension_numbers = #tpu.dot_dimension_numbers<[1], [1], [0], [0], [0, 0, 1, 0], [], []>} : vector<8x32xf32>, vector<32x32xf32>, vector<8x32xf32> -> vector<8x32xf32>
    %c8_i32 = arith.constant 8 : i32
    %38 = arith.muli %c0_i32, %c8_i32 : i32
    %39 = tpu.assume_multiple %38, 8 : i32
    %40 = arith.index_cast %39 : i32 to index
    %c0_14 = arith.constant 0 : index
    %41 = vector.load %arg12[%40, %c0_14] : memref<16x32xf32, #tpu.memory_space<vmem>>, vector<8x32xf32>
    tpu.vector_store %arg12[%40, %c0_14], %37 {strides = array<i32>} : memref<16x32xf32, #tpu.memory_space<vmem>>, vector<8x32xf32>,
    %cst_15 = arith.constant dense<0.000000e+00> : vector<48x32xf32>
    %42 = tpu.matmul %7, %36, %cst_15 {dimension_numbers = #tpu.dot_dimension_numbers<[0], [0], [1], [1], [0, 1, 1, 1], [], []>} : vector<8x48xf32>, vector<8x32xf32>, vector<48x32xf32> -> vector<48x32xf32>
    %cst_16 = arith.constant 0.949999988 : f32
    %43 = vector.broadcast %cst_16 : f32 to vector<16x32xf32>
    %44 = arith.mulf %43, %0 : vector<16x32xf32>
    %45 = vector.extract_strided_slice %42 {offsets = [0, 0], sizes = [16, 32], strides = [1, 1]} : vector<48x32xf32> to vector<16x32xf32>
    %cst_17 = arith.constant 1.000000e-01 : f32
    %46 = vector.broadcast %cst_17 : f32 to vector<16x32xf32>
    %47 = arith.mulf %46, %45 : vector<16x32xf32>
    %48 = arith.addf %44, %47 : vector<16x32xf32>
    %cst_18 = arith.constant 0.949999988 : f32
    %49 = vector.broadcast %cst_18 : f32 to vector<32x32xf32>
    %50 = arith.mulf %49, %1 : vector<32x32xf32>
    %51 = vector.extract_strided_slice %42 {offsets = [16, 0], sizes = [32, 32], strides = [1, 1]} : vector<48x32xf32> to vector<32x32xf32>
    %cst_19 = arith.constant 1.000000e-01 : f32
    %52 = vector.broadcast %cst_19 : f32 to vector<32x32xf32>
    %53 = arith.mulf %52, %51 : vector<32x32xf32>
    %54 = arith.addf %50, %53 : vector<32x32xf32>
    %55 = arith.mulf %48, %48 : vector<16x32xf32>
    %cst_20 = arith.constant dense<0.000000e+00> : vector<32xf32>
    %56 = vector.multi_reduction <add>, %55, %cst_20 [0] : vector<16x32xf32> to vector<32xf32>
    %57 = vector.shape_cast %56 : vector<32xf32> to vector<1x32xf32>
    %58 = arith.mulf %54, %54 : vector<32x32xf32>
    %cst_21 = arith.constant dense<0.000000e+00> : vector<32xf32>
    %59 = vector.multi_reduction <add>, %58, %cst_21 [0] : vector<32x32xf32> to vector<32xf32>
    %60 = vector.shape_cast %59 : vector<32xf32> to vector<1x32xf32>
    %61 = vector.shape_cast %57 : vector<1x32xf32> to vector<1x1x32xf32>
    %cst_22 = arith.constant dense<0.000000e+00> : vector<1xf32>
    %62 = vector.multi_reduction <add>, %61, %cst_22 [1, 2] : vector<1x1x32xf32> to vector<1xf32>
    %63 = vector.shape_cast %62 : vector<1xf32> to vector<1x1x1xf32>
    %64 = vector.extract %63[0, 0, 0] : f32 from vector<1x1x1xf32>
    %cst_23 = arith.constant 4.000000e+00 : f32
    %65 = arith.cmpf ogt, %64, %cst_23 : f32
    %cst_24 = arith.constant 1.000000e-24 : f32
    %66 = vector.broadcast %cst_24 : f32 to vector<1x32xf32>
    %67 = arith.maximumf %57, %66 : vector<1x32xf32>
    %68 = math.rsqrt %67 : vector<1x32xf32>
    %69 = vector.broadcast %68 : vector<1x32xf32> to vector<16x32xf32>
    %70 = arith.mulf %48, %69 : vector<16x32xf32>
    %cst_25 = arith.constant 1.000000e-24 : f32
    %71 = vector.broadcast %cst_25 : f32 to vector<1x32xf32>
    %72 = arith.maximumf %60, %71 : vector<1x32xf32>
    %73 = math.rsqrt %72 : vector<1x32xf32>
    %74 = vector.broadcast %73 : vector<1x32xf32> to vector<32x32xf32>
    %75 = arith.mulf %54, %74 : vector<32x32xf32>
    %76 = arith.select %65, %70, %48 : vector<16x32xf32>
    %77 = arith.select %65, %75, %54 : vector<32x32xf32>
    %c1_i32 = arith.constant 1 : i32
    %78 = arith.index_cast %c1_i32 : i32 to index
    %c0_26 = arith.constant 0 : index
    %c0_27 = arith.constant 0 : index
    %79 = vector.load %arg0[%78, %c0_26, %c0_27] : memref<2x8x16xf32, #tpu.memory_space<vmem>>, vector<1x8x16xf32>
    %80 = vector.shape_cast %79 : vector<1x8x16xf32> to vector<8x16xf32>
    %81 = arith.index_cast %c1_i32 : i32 to index
    %c0_28 = arith.constant 0 : index
    %c0_29 = arith.constant 0 : index
    %82 = vector.load %arg2[%81, %c0_28, %c0_29] : memref<2x8x48xf32, #tpu.memory_space<vmem>>, vector<1x8x48xf32>
    %83 = vector.shape_cast %82 : vector<1x8x48xf32> to vector<8x48xf32>
    %84 = arith.mulf %80, %80 : vector<8x16xf32>
    %cst_30 = arith.constant dense<0.000000e+00> : vector<8xf32>
    %85 = vector.multi_reduction <add>, %84, %cst_30 [1] : vector<8x16xf32> to vector<8xf32>
    %86 = vector.shape_cast %85 : vector<8xf32> to vector<8x1xf32>
    %87 = math.rsqrt %86 : vector<8x1xf32>
    %88 = arith.mulf %76, %76 : vector<16x32xf32>
    %cst_31 = arith.constant dense<0.000000e+00> : vector<32xf32>
    %89 = vector.multi_reduction <add>, %88, %cst_31 [0] : vector<16x32xf32> to vector<32xf32>
    %90 = vector.shape_cast %89 : vector<32xf32> to vector<1x32xf32>
    %91 = math.rsqrt %90 : vector<1x32xf32>
    %cst_32 = arith.constant dense<0.000000e+00> : vector<8x32xf32>
    %92 = tpu.matmul %80, %76, %cst_32 {dimension_numbers = #tpu.dot_dimension_numbers<[1], [0], [0], [1], [0, 0, 1, 1], [], []>} : vector<8x16xf32>, vector<16x32xf32>, vector<8x32xf32> -> vector<8x32xf32>
    %93 = vector.broadcast %87 : vector<8x1xf32> to vector<8x32xf32>
    %94 = vector.broadcast %91 : vector<1x32xf32> to vector<8x32xf32>
    %95 = arith.mulf %93, %94 : vector<8x32xf32>
    %96 = arith.mulf %92, %95 : vector<8x32xf32>
    %cst_33 = arith.constant dense<0xFF800000> : vector<8xf32>
    %97 = vector.multi_reduction <maximumf>, %96, %cst_33 [1] : vector<8x32xf32> to vector<8xf32>
    %98 = vector.shape_cast %97 : vector<8xf32> to vector<8x1xf32>
    %99 = vector.broadcast %98 : vector<8x1xf32> to vector<8x32xf32>
    %100 = arith.subf %96, %99 : vector<8x32xf32>
    %101 = math.exp %100 : vector<8x32xf32>
    %cst_34 = arith.constant dense<0.000000e+00> : vector<8xf32>
    %102 = vector.multi_reduction <add>, %101, %cst_34 [1] : vector<8x32xf32> to vector<8xf32>
    %103 = vector.shape_cast %102 : vector<8xf32> to vector<8x1xf32>
    %104 = vector.broadcast %103 : vector<8x1xf32> to vector<8x32xf32>
    %105 = arith.divf %101, %104 : vector<8x32xf32>
    %cst_35 = arith.constant 2.000000e+00 : f32
    %106 = vector.broadcast %cst_35 : f32 to vector<8x32xf32>
    %107 = arith.mulf %100, %106 : vector<8x32xf32>
    %108 = math.exp %107 : vector<8x32xf32>
    %cst_36 = arith.constant dense<0.000000e+00> : vector<8xf32>
    %109 = vector.multi_reduction <add>, %108, %cst_36 [1] : vector<8x32xf32> to vector<8xf32>
    %110 = vector.shape_cast %109 : vector<8xf32> to vector<8x1xf32>
    %111 = vector.broadcast %110 : vector<8x1xf32> to vector<8x32xf32>
    %112 = arith.divf %108, %111 : vector<8x32xf32>
    %cst_37 = arith.constant dense<0.000000e+00> : vector<8x32xf32>
    %113 = tpu.matmul %105, %77, %cst_37 {dimension_numbers = #tpu.dot_dimension_numbers<[1], [1], [0], [0], [0, 0, 1, 0], [], []>} : vector<8x32xf32>, vector<32x32xf32>, vector<8x32xf32> -> vector<8x32xf32>
    %c8_i32_38 = arith.constant 8 : i32
    %114 = arith.muli %c1_i32, %c8_i32_38 : i32
    %115 = tpu.assume_multiple %114, 8 : i32
    %116 = arith.index_cast %115 : i32 to index
    %c0_39 = arith.constant 0 : index
    %117 = vector.load %arg12[%116, %c0_39] : memref<16x32xf32, #tpu.memory_space<vmem>>, vector<8x32xf32>
    tpu.vector_store %arg12[%116, %c0_39], %113 {strides = array<i32>} : memref<16x32xf32, #tpu.memory_space<vmem>>, vector<8x32xf32>,
    %cst_40 = arith.constant dense<0.000000e+00> : vector<48x32xf32>
    %118 = tpu.matmul %83, %112, %cst_40 {dimension_numbers = #tpu.dot_dimension_numbers<[0], [0], [1], [1], [0, 1, 1, 1], [], []>} : vector<8x48xf32>, vector<8x32xf32>, vector<48x32xf32> -> vector<48x32xf32>
    %cst_41 = arith.constant 0.949999988 : f32
    %119 = vector.broadcast %cst_41 : f32 to vector<16x32xf32>
    %120 = arith.mulf %119, %76 : vector<16x32xf32>
    %121 = vector.extract_strided_slice %118 {offsets = [0, 0], sizes = [16, 32], strides = [1, 1]} : vector<48x32xf32> to vector<16x32xf32>
    %cst_42 = arith.constant 1.000000e-01 : f32
    %122 = vector.broadcast %cst_42 : f32 to vector<16x32xf32>
    %123 = arith.mulf %122, %121 : vector<16x32xf32>
    %124 = arith.addf %120, %123 : vector<16x32xf32>
    %cst_43 = arith.constant 0.949999988 : f32
    %125 = vector.broadcast %cst_43 : f32 to vector<32x32xf32>
    %126 = arith.mulf %125, %77 : vector<32x32xf32>
    %127 = vector.extract_strided_slice %118 {offsets = [16, 0], sizes = [32, 32], strides = [1, 1]} : vector<48x32xf32> to vector<32x32xf32>
    %cst_44 = arith.constant 1.000000e-01 : f32
    %128 = vector.broadcast %cst_44 : f32 to vector<32x32xf32>
    %129 = arith.mulf %128, %127 : vector<32x32xf32>
    %130 = arith.addf %126, %129 : vector<32x32xf32>
    %131 = arith.mulf %124, %124 : vector<16x32xf32>
    %cst_45 = arith.constant dense<0.000000e+00> : vector<32xf32>
    %132 = vector.multi_reduction <add>, %131, %cst_45 [0] : vector<16x32xf32> to vector<32xf32>
    %133 = vector.shape_cast %132 : vector<32xf32> to vector<1x32xf32>
    %134 = arith.mulf %130, %130 : vector<32x32xf32>
    %cst_46 = arith.constant dense<0.000000e+00> : vector<32xf32>
    %135 = vector.multi_reduction <add>, %134, %cst_46 [0] : vector<32x32xf32> to vector<32xf32>
    %136 = vector.shape_cast %135 : vector<32xf32> to vector<1x32xf32>
    %137 = vector.shape_cast %133 : vector<1x32xf32> to vector<1x1x32xf32>
    %cst_47 = arith.constant dense<0.000000e+00> : vector<1xf32>
    %138 = vector.multi_reduction <add>, %137, %cst_47 [1, 2] : vector<1x1x32xf32> to vector<1xf32>
    %139 = vector.shape_cast %138 : vector<1xf32> to vector<1x1x1xf32>
    %140 = vector.extract %139[0, 0, 0] : f32 from vector<1x1x1xf32>
    %cst_48 = arith.constant 4.000000e+00 : f32
    %141 = arith.cmpf ogt, %140, %cst_48 : f32
    %cst_49 = arith.constant 1.000000e-24 : f32
    %142 = vector.broadcast %cst_49 : f32 to vector<1x32xf32>
    %143 = arith.maximumf %133, %142 : vector<1x32xf32>
    %144 = math.rsqrt %143 : vector<1x32xf32>
    %145 = vector.broadcast %144 : vector<1x32xf32> to vector<16x32xf32>
    %146 = arith.mulf %124, %145 : vector<16x32xf32>
    %cst_50 = arith.constant 1.000000e-24 : f32
    %147 = vector.broadcast %cst_50 : f32 to vector<1x32xf32>
    %148 = arith.maximumf %136, %147 : vector<1x32xf32>
    %149 = math.rsqrt %148 : vector<1x32xf32>
    %150 = vector.broadcast %149 : vector<1x32xf32> to vector<32x32xf32>
    %151 = arith.mulf %130, %150 : vector<32x32xf32>
    %152 = arith.select %141, %146, %124 : vector<16x32xf32>
    %153 = arith.select %141, %151, %130 : vector<32x32xf32>
    %c2_i32 = arith.constant 2 : i32
    %c0_51 = arith.constant 0 : index
    %c0_52 = arith.constant 0 : index
    %154 = vector.load %arg10[%c0_51, %c0_52] : memref<16x32xf32, #tpu.memory_space<vmem>>, vector<16x32xf32>
    tpu.vector_store %arg10[%c0_51, %c0_52], %152 {strides = array<i32>} : memref<16x32xf32, #tpu.memory_space<vmem>>, vector<16x32xf32>,
    %c0_53 = arith.constant 0 : index
    %c0_54 = arith.constant 0 : index
    %155 = vector.load %arg11[%c0_53, %c0_54] : memref<32x32xf32, #tpu.memory_space<vmem>>, vector<32x32xf32>
    tpu.vector_store %arg11[%c0_53, %c0_54], %153 {strides = array<i32>} : memref<32x32xf32, #tpu.memory_space<vmem>>, vector<32x32xf32>,
    %c0_55 = arith.constant 0 : index
    %c0_56 = arith.constant 0 : index
    %156 = vector.load %arg5[%c0_55, %c0_56] : memref<64x32xf32, #tpu.memory_space<vmem>>, vector<32x32xf32>
    %c32 = arith.constant 32 : index
    %c0_57 = arith.constant 0 : index
    %157 = vector.load %arg5[%c32, %c0_57] : memref<64x32xf32, #tpu.memory_space<vmem>>, vector<32x32xf32>
    %c0_58 = arith.constant 0 : index
    %c0_59 = arith.constant 0 : index
    %158 = vector.load %arg1[%c0_58, %c0_59] : memref<16x32xf32, #tpu.memory_space<vmem>>, vector<16x32xf32>
    %c0_60 = arith.constant 0 : index
    %c0_61 = arith.constant 0 : index
    %159 = vector.load %arg12[%c0_60, %c0_61] : memref<16x32xf32, #tpu.memory_space<vmem>>, vector<16x32xf32>
    %cst_62 = arith.constant dense<0.000000e+00> : vector<16x32xf32>
    %160 = tpu.matmul %158, %156, %cst_62 {dimension_numbers = #tpu.dot_dimension_numbers<[1], [0], [0], [1], [0, 0, 1, 1], [], []>} : vector<16x32xf32>, vector<32x32xf32>, vector<16x32xf32> -> vector<16x32xf32>
    %cst_63 = arith.constant dense<0.000000e+00> : vector<16x32xf32>
    %161 = tpu.matmul %159, %157, %cst_63 {dimension_numbers = #tpu.dot_dimension_numbers<[1], [0], [0], [1], [0, 0, 1, 1], [], []>} : vector<16x32xf32>, vector<32x32xf32>, vector<16x32xf32> -> vector<16x32xf32>
    %162 = arith.addf %160, %161 : vector<16x32xf32>
    %c0_64 = arith.constant 0 : index
    %c0_65 = arith.constant 0 : index
    %163 = vector.load %arg6[%c0_64, %c0_65] : memref<1x32xf32, #tpu.memory_space<vmem>>, vector<1x32xf32>
    %164 = vector.broadcast %163 : vector<1x32xf32> to vector<16x32xf32>
    %165 = arith.addf %162, %164 : vector<16x32xf32>
    %cst_66 = arith.constant 0.000000e+00 : f32
    %166 = vector.broadcast %cst_66 : f32 to vector<16x32xf32>
    %167 = arith.maximumf %165, %166 : vector<16x32xf32>
    %c0_67 = arith.constant 0 : index
    %c0_68 = arith.constant 0 : index
    %168 = vector.load %arg7[%c0_67, %c0_68] : memref<32x32xf32, #tpu.memory_space<vmem>>, vector<32x32xf32>
    %cst_69 = arith.constant dense<0.000000e+00> : vector<16x32xf32>
    %169 = tpu.matmul %167, %168, %cst_69 {dimension_numbers = #tpu.dot_dimension_numbers<[1], [0], [0], [1], [0, 0, 1, 1], [], []>} : vector<16x32xf32>, vector<32x32xf32>, vector<16x32xf32> -> vector<16x32xf32>
    %c0_70 = arith.constant 0 : index
    %c0_71 = arith.constant 0 : index
    %170 = vector.load %arg8[%c0_70, %c0_71] : memref<1x32xf32, #tpu.memory_space<vmem>>, vector<1x32xf32>
    %171 = vector.broadcast %170 : vector<1x32xf32> to vector<16x32xf32>
    %172 = arith.addf %169, %171 : vector<16x32xf32>
    %c0_72 = arith.constant 0 : index
    %c0_73 = arith.constant 0 : index
    %173 = vector.load %arg9[%c0_72, %c0_73] : memref<16x32xf32, #tpu.memory_space<vmem>>, vector<16x32xf32>
    tpu.vector_store %arg9[%c0_72, %c0_73], %172 {strides = array<i32>} : memref<16x32xf32, #tpu.memory_space<vmem>>, vector<16x32xf32>,
    return
  }
}

</mosaic_0001>

<llo_original>
// kernel: tpu_custom_call.1
$region0: #{tpu_custom_call.1}
  #allocation0 [shape = 'u32[]', space=smem, size = 0x4, offset = 0x4, fixed_abs, tag = 'smem constant byte address 0x4 - core index']
  #allocation1 [shape = 'u32[144,128]{1,0:T(1,128)}', space=vmem, size = 0x12000, scoped, tag = 'internal scratch']
  #allocation2 [shape = 'f32[16,32]{1,0:T(8,128)}', space=vmem, size = 0x2000, scoped, tag = 'scratch operand']
  %s0 = inlined_call_operand.vmem [shape: f32[2,8,16], index: 0, kind: input, shape index: {}]
  %s1 = inlined_call_operand.vmem [shape: f32[16,32], index: 1, kind: input, shape index: {}]
  %s2 = inlined_call_operand.hbm [shape: f32[2,8,48], index: 2, kind: input, shape index: {}]
  %s3 = inlined_call_operand.hbm [shape: f32[16,32], index: 3, kind: input, shape index: {}]
  %s4 = inlined_call_operand.vmem [shape: f32[32,32], index: 4, kind: input, shape index: {}]
  %s5 = inlined_call_operand.vmem [shape: f32[64,32], index: 5, kind: input, shape index: {}]
  %s6 = inlined_call_operand.vmem [shape: f32[1,32], index: 6, kind: input, shape index: {}]
  %s7 = inlined_call_operand.vmem [shape: f32[32,32], index: 7, kind: input, shape index: {}]
  %s8 = inlined_call_operand.vmem [shape: f32[1,32], index: 8, kind: input, shape index: {}]
  %s9 = inlined_call_operand.hbm [shape: f32[16,32], index: 9, kind: output, shape index: {0}]
  %s10 = inlined_call_operand.hbm [shape: f32[16,32], index: 10, kind: output, shape index: {1}]
  %s11 = inlined_call_operand.hbm [shape: f32[32,32], index: 11, kind: output, shape index: {2}]
  %12 = xla_tuple %s9, %s10, %s11
  %s13 = sld [smem:[#allocation0]]
  $region70: #{tpu_custom_call.1} parent=0
    _
  %s15 = ssub.s32 1, %s13
  %s16 = scalar_select 0, %s15, %s13
  $region1: #{tpu_custom_call.1} parent=0
    #allocation3 [shape = 'u8[8192]{0}', space=vmem, size = 0x2000, scoped, tag = 'input window, operand 2, single buffered']
    #allocation4 [shape = 's32[1]{0}', space=sflag, size = 0x4, scoped, tag = 'scoped memory for tpu_custom_call.1']
    #allocation5 [shape = 's32[1]{0}', space=sflag, size = 0x4, scoped, tag = 'scoped memory for tpu_custom_call.1']
    #allocation6 [shape = 'u8[8192]{0}', space=vmem, size = 0x2000, scoped, tag = 'input window, operand 3, single buffered']
    #allocation7 [shape = 's32[1]{0}', space=sflag, size = 0x4, scoped, tag = 'scoped memory for tpu_custom_call.1']
    #allocation8 [shape = 'u8[8192]{0}', space=vmem, size = 0x2000, scoped, tag = 'output window, operand 0, single buffered']
    #allocation9 [shape = 'u8[8192]{0}', space=vmem, size = 0x2000, scoped, tag = 'output window, operand 1, single buffered']
    #allocation10 [shape = 's32[1]{0}', space=sflag, size = 0x4, scoped, tag = 'scoped memory for tpu_custom_call.1']
    #allocation11 [shape = 'u8[16384]{0}', space=vmem, size = 0x4000, scoped, tag = 'output window, operand 2, single buffered']
    %17 = vsyncpa [#allocation4], 0
    %18 = vsyncpa [#allocation7], 0
    %19 = vsyncpa [#allocation5], 0
    %20 = vsyncpa [#allocation10], 0
    // Predicated region
    $region2: #{tpu_custom_call.1} parent=1 // pred_check
      _
    $region3: #{tpu_custom_call.1} parent=1 // pred_check_branch
      %22 = sbr.rel (0) target = $region5
    $region4: #{tpu_custom_call.1} parent=1 // pred_region
      _
    $region5: #{tpu_custom_call.1} parent=1 // pred_fallthru
      _
    // Predicated region
    $region6: #{tpu_custom_call.1} parent=1 // pred_check
      _
    $region7: #{tpu_custom_call.1} parent=1 // pred_check_branch
      %24 = sbr.rel (0) target = $region9
    $region8: #{tpu_custom_call.1} parent=1 // pred_region
      _
    $region9: #{tpu_custom_call.1} parent=1 // pred_fallthru
      _
    // Predicated region
    $region10: #{tpu_custom_call.1} parent=1 // pred_check
      _
    $region11: #{tpu_custom_call.1} parent=1 // pred_check_branch
      %26 = sbr.rel (0) target = $region13
    $region12: #{tpu_custom_call.1} parent=1 // pred_region
      %s28 = ssub.s32 256, 256
      %29 = vsyncadd [#allocation4], %s28
      %s30 = sshll.u32 [#allocation3], 4
      %s31 = int_to_ptr.vmem [resolvable:$true] %s30
      %36 = dma.hbm_to_vmem [thread:$0]  %s2, 256, %s31, [#allocation4], 128, 128, 8
    $region13: #{tpu_custom_call.1} parent=1 // pred_fallthru
      _
    // Predicated region
    $region14: #{tpu_custom_call.1} parent=1 // pred_check
      _
    $region15: #{tpu_custom_call.1} parent=1 // pred_check_branch
      %38 = sbr.rel (0) target = $region17
    $region16: #{tpu_custom_call.1} parent=1 // pred_region
      %s40 = ssub.s32 256, 256
      %41 = vsyncadd [#allocation7], %s40
      %s42 = sshll.u32 [#allocation6], 4
      %s43 = int_to_ptr.vmem [resolvable:$true] %s42
      %48 = dma.hbm_to_vmem [thread:$0]  %s3, 256, %s43, [#allocation7], 128, 128, 8
    $region17: #{tpu_custom_call.1} parent=1 // pred_fallthru
      _
    // Predicated region
    $region18: #{tpu_custom_call.1} parent=1 // pred_check
      _
    $region19: #{tpu_custom_call.1} parent=1 // pred_check_branch
      %50 = sbr.rel (0) target = $region21
    $region20: #{tpu_custom_call.1} parent=1 // pred_region
      _
    $region21: #{tpu_custom_call.1} parent=1 // pred_fallthru
      _
    // Predicated region
    $region22: #{tpu_custom_call.1} parent=1 // pred_check
      _
    $region23: #{tpu_custom_call.1} parent=1 // pred_check_branch
      %52 = sbr.rel (0) target = $region25
    $region24: #{tpu_custom_call.1} parent=1 // pred_region
      _
    $region25: #{tpu_custom_call.1} parent=1 // pred_fallthru
      _
    // Predicated region
    $region26: #{tpu_custom_call.1} parent=1 // pred_check
      _
    $region27: #{tpu_custom_call.1} parent=1 // pred_check_branch
      %54 = sbr.rel (0) target = $region29
    $region28: #{tpu_custom_call.1} parent=1 // pred_region
      _
    $region29: #{tpu_custom_call.1} parent=1 // pred_fallthru
      _
    // Predicated region
    $region30: #{tpu_custom_call.1} parent=1 // pred_check
      _
    $region31: #{tpu_custom_call.1} parent=1 // pred_check_branch
      %56 = sbr.rel (0) target = $region33
    $region32: #{tpu_custom_call.1} parent=1 // pred_region
      _
    $region33: #{tpu_custom_call.1} parent=1 // pred_fallthru
      _
    // Predicated region
    $region34: #{tpu_custom_call.1} parent=1 // pred_check
      _
    $region35: #{tpu_custom_call.1} parent=1 // pred_check_branch
      %58 = sbr.rel (0) target = $region37
    $region36: #{tpu_custom_call.1} parent=1 // pred_region
      _
    $region37: #{tpu_custom_call.1} parent=1 // pred_fallthru
      _
    // Predicated region
    $region38: #{tpu_custom_call.1} parent=1 // pred_check
      _
    $region39: #{tpu_custom_call.1} parent=1 // pred_check_branch
      %60 = sbr.rel (0) target = $region41
    $region40: #{tpu_custom_call.1} parent=1 // pred_region
      %61 = dma.done [#allocation4], 256
    $region41: #{tpu_custom_call.1} parent=1 // pred_fallthru
      _
    // Predicated region
    $region42: #{tpu_custom_call.1} parent=1 // pred_check
      _
    $region43: #{tpu_custom_call.1} parent=1 // pred_check_branch
      %63 = sbr.rel (0) target = $region45
    $region44: #{tpu_custom_call.1} parent=1 // pred_region
      %64 = dma.done [#allocation7], 256
    $region45: #{tpu_custom_call.1} parent=1 // pred_fallthru
      _
    %v65 = vld [vmem:[#allocation6] sm:$0xff]
    %v66 = vld [vmem:[#allocation6 + $0x8] sm:$0xff]
    %v67 = vld [vmem:[%s4] sm:$0xff]
    %v68 = vld [vmem:[%s4 + $0x8] sm:$0xff]
    %v69 = vld [vmem:[%s4 + $0x10] sm:$0xff]
    %v70 = vld [vmem:[%s4 + $0x18] sm:$0xff]
    %v71 = vld [vmem:[%s0] sm:$0xff]
    %v72 = vld [vmem:[#allocation3] sm:$0xff]
    %v73 = vmul.f32 %v71, %v71
    %vm74 = vcmask 130048
    %v75 = vsel %vm74, %v73, 0.0
    %76 = vadd.xlane.f32.xlu0 %v75
    %v77 = vpop.xlane.xlu0 %76
    %v78 = vrsqrt.pop %v77
    %v79 = vmul.f32 %v65, %v65
    %v80 = vmul.f32 %v66, %v66
    %vm81 = vcmask 261120
    %v82 = vsel %vm81, %v79, 0.0
    %v83 = vsel %vm81, %v80, 0.0
    %v84 = vadd.f32 %v82, %v83
    %v85 = vrot.slane %v84, 4
    %v86 = vadd.f32 %v84, %v85
    %v87 = vrot.slane %v86, 2
    %v88 = vadd.f32 %v86, %v87
    %v89 = vrot.slane %v88, 1
    %v90 = vadd.f32 %v88, %v89
    %v91 = vrsqrt.pop %v90
    %v93 = vsel %vm74, %v71, 0
    %95 = vmatprep.subr.mxu0 0.0
    %96 = vmatpush1.msra.mxu0 %v65
    %97 = vmatprep.subr.mxu0 0.0
    %98 = vmatpush1.msra.mxu0 %v66
    %99 = vmatprep.subr.mxu0 0.0
    %100 = vmatpush1.msra.mxu0 0.0
    %101 = vmatprep.subr.mxu0 0.0
    %102 = vmatpush1.msra.mxu0 0.0
    %103 = vmatprep.subr.mxu0 0.0
    %104 = vmatpush1.msra.mxu0 0.0
    %105 = vmatprep.subr.mxu0 0.0
    %106 = vmatpush1.msra.mxu0 0.0
    %107 = vmatprep.subr.mxu0 0.0
    %108 = vmatpush1.msra.mxu0 0.0
    %109 = vmatprep.subr.mxu0 0.0
    %110 = vmatpush1.msra.mxu0 0.0
    %111 = vmatprep.subr.mxu0 0.0
    %112 = vmatpush1.msra.mxu0 0.0
    %113 = vmatprep.subr.mxu0 0.0
    %114 = vmatpush1.msra.mxu0 0.0
    %115 = vmatprep.subr.mxu0 0.0
    %116 = vmatpush1.msra.mxu0 0.0
    %117 = vmatprep.subr.mxu0 0.0
    %118 = vmatpush1.msra.mxu0 0.0
    %119 = vmatprep.subr.mxu0 0.0
    %120 = vmatpush1.msra.mxu0 0.0
    %121 = vmatprep.subr.mxu0 0.0
    %122 = vmatpush1.msra.mxu0 0.0
    %123 = vmatprep.subr.mxu0 0.0
    %124 = vmatpush1.msra.mxu0 0.0
    %125 = vmatprep.subr.mxu0 0.0
    %126 = vmatpush1.msra.mxu0 0.0
    %127 = vmatprep.subr.mxu0 0.0
    %128 = vmatpush1.msra.mxu0 0.0
    %129 = vmatprep.subr.mxu0 0.0
    %130 = vmatpush1.msra.mxu0 0.0
    %131 = vmatprep.subr.mxu0 0.0
    %132 = vmatpush1.msra.mxu0 0.0
    %133 = vmatprep.subr.mxu0 0.0
    %134 = vmatpush1.msra.mxu0 0.0
    %135 = vmatprep.subr.mxu0 0.0
    %136 = vmatpush1.msra.mxu0 0.0
    %137 = vmatprep.subr.mxu0 0.0
    %138 = vmatpush1.msra.mxu0 0.0
    %139 = vmatprep.subr.mxu0 0.0
    %140 = vmatpush1.msra.mxu0 0.0
    %141 = vmatprep.subr.mxu0 0.0
    %142 = vmatpush1.msra.mxu0 0.0
    %143 = vmatprep.subr.mxu0 0.0
    %144 = vmatpush1.msra.mxu0 0.0
    %145 = vmatprep.subr.mxu0 0.0
    %146 = vmatpush1.msra.mxu0 0.0
    %147 = vmatprep.subr.mxu0 0.0
    %148 = vmatpush1.msra.mxu0 0.0
    %149 = vmatprep.subr.mxu0 0.0
    %150 = vmatpush1.msra.mxu0 0.0
    %151 = vmatprep.subr.mxu0 0.0
    %152 = vmatpush1.msra.mxu0 0.0
    %153 = vmatprep.subr.mxu0 0.0
    %154 = vmatpush1.msra.mxu0 0.0
    %155 = vmatprep.subr.mxu0 0.0
    %156 = vmatpush1.msra.mxu0 0.0
    %157 = vmatprep.subr.mxu0 0.0
    %158 = vmatpush1.msra.mxu0 0.0
    %159 = vmatprep.mubr.f32.mxu0 0.0
    %160 = vmatmul.mubr.f32.gmra.mrb[0].mxu0 %v93
    %v161 = vpop.f32.mrb[0].mxu0
    %v162 = vadd.f32 0.0, %v161
    %v163 = vpop.f32.mrb[0].mxu0
    %164 = vdwg.mxu0
    %v165 = vmul.f32 %v78, %v91
    %v166 = vmul.f32 %v162, %v165
    %v167 = vsel %vm81, %v166, -inf
    %168 = vmax.xlane.f32.xlu0 %v167
    %v169 = vpop.xlane.xlu0 %168
    %v170 = vsub.f32 %v166, %v169
    %v171 = vmul.f32 %v170, 1.442695
    %v172 = vpow.pop %v171
    %v173 = vsel %vm81, %v172, 0.0
    %174 = vadd.xlane.f32.xlu0 %v173
    %v175 = vpop.xlane.xlu0 %174
    %v176 = vrcp.pop %v175
    %v177 = vmul.f32 %v172, %v176
    %v178 = vmul.f32 %v170, 2.0
    %v179 = vmul.f32 %v178, 1.442695
    %v180 = vpow.pop %v179
    %v181 = vsel %vm81, %v180, 0.0
    %182 = vadd.xlane.f32.xlu0 %v181
    %v183 = vpop.xlane.xlu0 %182
    %v184 = vrcp.pop %v183
    %v185 = vmul.f32 %v180, %v184
    %v187 = vsel %vm81, %v177, 0
    %v190 = vsel %vm81, %v67, 0
    %v193 = vsel %vm81, %v68, 0
    %v196 = vsel %vm81, %v69, 0
    %v199 = vsel %vm81, %v70, 0
    %201 = vmatprep.subr.mxu0 0.0
    %202 = vmatpush1.xpose.msra.mxu0 %v190
    %203 = vmatprep.subr.mxu0 0.0
    %204 = vmatpush1.xpose.msra.mxu0 %v193
    %205 = vmatprep.subr.mxu0 0.0
    %206 = vmatpush1.xpose.msra.mxu0 %v196
    %207 = vmatprep.subr.mxu0 0.0
    %208 = vmatpush1.xpose.msra.mxu0 %v199
    %209 = vmatprep.subr.mxu0 0.0
    %210 = vmatpush1.xpose.msra.mxu0 0.0
    %211 = vmatprep.subr.mxu0 0.0
    %212 = vmatpush1.xpose.msra.mxu0 0.0
    %213 = vmatprep.subr.mxu0 0.0
    %214 = vmatpush1.xpose.msra.mxu0 0.0
    %215 = vmatprep.subr.mxu0 0.0
    %216 = vmatpush1.xpose.msra.mxu0 0.0
    %217 = vmatprep.subr.mxu0 0.0
    %218 = vmatpush1.xpose.msra.mxu0 0.0
    %219 = vmatprep.subr.mxu0 0.0
    %220 = vmatpush1.xpose.msra.mxu0 0.0
    %221 = vmatprep.subr.mxu0 0.0
    %222 = vmatpush1.xpose.msra.mxu0 0.0
    %223 = vmatprep.subr.mxu0 0.0
    %224 = vmatpush1.xpose.msra.mxu0 0.0
    %225 = vmatprep.subr.mxu0 0.0
    %226 = vmatpush1.xpose.msra.mxu0 0.0
    %227 = vmatprep.subr.mxu0 0.0
    %228 = vmatpush1.xpose.msra.mxu0 0.0
    %229 = vmatprep.subr.mxu0 0.0
    %230 = vmatpush1.xpose.msra.mxu0 0.0
    %231 = vmatprep.subr.mxu0 0.0
    %232 = vmatpush1.xpose.msra.mxu0 0.0
    %233 = vmatprep.subr.mxu0 0.0
    %234 = vmatpush1.xpose.msra.mxu0 0.0
    %235 = vmatprep.subr.mxu0 0.0
    %236 = vmatpush1.xpose.msra.mxu0 0.0
    %237 = vmatprep.subr.mxu0 0.0
    %238 = vmatpush1.xpose.msra.mxu0 0.0
    %239 = vmatprep.subr.mxu0 0.0
    %240 = vmatpush1.xpose.msra.mxu0 0.0
    %241 = vmatprep.subr.mxu0 0.0
    %242 = vmatpush1.xpose.msra.mxu0 0.0
    %243 = vmatprep.subr.mxu0 0.0
    %244 = vmatpush1.xpose.msra.mxu0 0.0
    %245 = vmatprep.subr.mxu0 0.0
    %246 = vmatpush1.xpose.msra.mxu0 0.0
    %247 = vmatprep.subr.mxu0 0.0
    %248 = vmatpush1.xpose.msra.mxu0 0.0
    %249 = vmatprep.subr.mxu0 0.0
    %250 = vmatpush1.xpose.msra.mxu0 0.0
    %251 = vmatprep.subr.mxu0 0.0
    %252 = vmatpush1.xpose.msra.mxu0 0.0
    %253 = vmatprep.subr.mxu0 0.0
    %254 = vmatpush1.xpose.msra.mxu0 0.0
    %255 = vmatprep.subr.mxu0 0.0
    %256 = vmatpush1.xpose.msra.mxu0 0.0
    %257 = vmatprep.subr.mxu0 0.0
    %258 = vmatpush1.xpose.msra.mxu0 0.0
    %259 = vmatprep.subr.mxu0 0.0
    %260 = vmatpush1.xpose.msra.mxu0 0.0
    %261 = vmatprep.subr.mxu0 0.0
    %262 = vmatpush1.xpose.msra.mxu0 0.0
    %263 = vmatprep.subr.mxu0 0.0
    %264 = vmatpush1.xpose.msra.mxu0 0.0
    %265 = vmatprep.mubr.f32.mxu0 0.0
    %266 = vmatmul.mubr.f32.gmra.mrb[0].mxu0 %v187
    %v267 = vpop.f32.mrb[0].mxu0
    %v268 = vadd.f32 0.0, %v267
    %v269 = vpop.f32.mrb[0].mxu0
    %270 = vdwg.mxu0
    %271 = vst.msk [vmem:[#allocation2] sm:$0xff] %vm81, %v268
    %272 = vxpose.xlu0.b32.start [1/16] %v72, 128
    %273 = vxpose.xlu0.b32.cont [2/16] 0.0, 128
    %274 = vxpose.xlu0.b32.cont [3/16] 0.0, 128
    %275 = vxpose.xlu0.b32.cont [4/16] 0.0, 128
    %276 = vxpose.xlu0.b32.cont [5/16] 0.0, 128
    %277 = vxpose.xlu0.b32.cont [6/16] 0.0, 128
    %278 = vxpose.xlu0.b32.cont [7/16] 0.0, 128
    %279 = vxpose.xlu0.b32.cont [8/16] 0.0, 128
    %280 = vxpose.xlu0.b32.cont [9/16] 0.0, 128
    %281 = vxpose.xlu0.b32.cont [10/16] 0.0, 128
    %282 = vxpose.xlu0.b32.cont [11/16] 0.0, 128
    %283 = vxpose.xlu0.b32.cont [12/16] 0.0, 128
    %284 = vxpose.xlu0.b32.cont [13/16] 0.0, 128
    %285 = vxpose.xlu0.b32.cont [14/16] 0.0, 128
    %286 = vxpose.xlu0.b32.cont [15/16] 0.0, 128
    %287 = vxpose.xlu0.b32.end [16/16] 0.0, 128
    %v288 = vpop.trf.xlu0
    %v289 = vpop.trf.xlu0
    %v290 = vpop.trf.xlu0
    %v291 = vpop.trf.xlu0
    %v292 = vpop.trf.xlu0
    %v293 = vpop.trf.xlu0
    %v294 = vpop.trf.xlu0
    %v295 = vpop.trf.xlu0
    %v296 = vpop.trf.xlu0
    %v297 = vpop.trf.xlu0
    %v298 = vpop.trf.xlu0
    %v299 = vpop.trf.xlu0
    %v300 = vpop.trf.xlu0
    %v301 = vpop.trf.xlu0
    %v302 = vpop.trf.xlu0
    %v303 = vpop.trf.xlu0
    %vm304 = vcmask 64512
    %v306 = vsel %vm304, %v288, 0
    %v309 = vsel %vm304, %v289, 0
    %v312 = vsel %vm304, %v290, 0
    %v315 = vsel %vm304, %v291, 0
    %v318 = vsel %vm304, %v292, 0
    %v321 = vsel %vm304, %v293, 0
    %323 = vmatprep.subr.mxu0 0.0
    %324 = vmatpush1.msra.mxu0 %v185
    %325 = vmatprep.subr.mxu0 0.0
    %326 = vmatpush1.msra.mxu0 0.0
    %327 = vmatprep.subr.mxu0 0.0
    %328 = vmatpush1.msra.mxu0 0.0
    %329 = vmatprep.subr.mxu0 0.0
    %330 = vmatpush1.msra.mxu0 0.0
    %331 = vmatprep.subr.mxu0 0.0
    %332 = vmatpush1.msra.mxu0 0.0
    %333 = vmatprep.subr.mxu0 0.0
    %334 = vmatpush1.msra.mxu0 0.0
    %335 = vmatprep.subr.mxu0 0.0
    %336 = vmatpush1.msra.mxu0 0.0
    %337 = vmatprep.subr.mxu0 0.0
    %338 = vmatpush1.msra.mxu0 0.0
    %339 = vmatprep.subr.mxu0 0.0
    %340 = vmatpush1.msra.mxu0 0.0
    %341 = vmatprep.subr.mxu0 0.0
    %342 = vmatpush1.msra.mxu0 0.0
    %343 = vmatprep.subr.mxu0 0.0
    %344 = vmatpush1.msra.mxu0 0.0
    %345 = vmatprep.subr.mxu0 0.0
    %346 = vmatpush1.msra.mxu0 0.0
    %347 = vmatprep.subr.mxu0 0.0
    %348 = vmatpush1.msra.mxu0 0.0
    %349 = vmatprep.subr.mxu0 0.0
    %350 = vmatpush1.msra.mxu0 0.0
    %351 = vmatprep.subr.mxu0 0.0
    %352 = vmatpush1.msra.mxu0 0.0
    %353 = vmatprep.subr.mxu0 0.0
    %354 = vmatpush1.msra.mxu0 0.0
    %355 = vmatprep.subr.mxu0 0.0
    %356 = vmatpush1.msra.mxu0 0.0
    %357 = vmatprep.subr.mxu0 0.0
    %358 = vmatpush1.msra.mxu0 0.0
    %359 = vmatprep.subr.mxu0 0.0
    %360 = vmatpush1.msra.mxu0 0.0
    %361 = vmatprep.subr.mxu0 0.0
    %362 = vmatpush1.msra.mxu0 0.0
    %363 = vmatprep.subr.mxu0 0.0
    %364 = vmatpush1.msra.mxu0 0.0
    %365 = vmatprep.subr.mxu0 0.0
    %366 = vmatpush1.msra.mxu0 0.0
    %367 = vmatprep.subr.mxu0 0.0
    %368 = vmatpush1.msra.mxu0 0.0
    %369 = vmatprep.subr.mxu0 0.0
    %370 = vmatpush1.msra.mxu0 0.0
    %371 = vmatprep.subr.mxu0 0.0
    %372 = vmatpush1.msra.mxu0 0.0
    %373 = vmatprep.subr.mxu0 0.0
    %374 = vmatpush1.msra.mxu0 0.0
    %375 = vmatprep.subr.mxu0 0.0
    %376 = vmatpush1.msra.mxu0 0.0
    %377 = vmatprep.subr.mxu0 0.0
    %378 = vmatpush1.msra.mxu0 0.0
    %379 = vmatprep.subr.mxu0 0.0
    %380 = vmatpush1.msra.mxu0 0.0
    %381 = vmatprep.subr.mxu0 0.0
    %382 = vmatpush1.msra.mxu0 0.0
    %383 = vmatprep.subr.mxu0 0.0
    %384 = vmatpush1.msra.mxu0 0.0
    %385 = vmatprep.subr.mxu0 0.0
    %386 = vmatpush1.msra.mxu0 0.0
    %387 = vmatprep.mubr.f32.mxu0 0.0
    %388 = vmatmul.mubr.f32.gmra.mrb[0].mxu0 %v306
    %v389 = vpop.f32.mrb[0].mxu0
    %v390 = vadd.f32 0.0, %v389
    %v391 = vpop.f32.mrb[0].mxu0
    %392 = vmatprep.mubr.f32.mxu0 0.0
    %393 = vmatmul.mubr.f32.gmra.mrb[0].mxu0 %v309
    %v394 = vpop.f32.mrb[0].mxu0
    %v395 = vadd.f32 0.0, %v394
    %v396 = vpop.f32.mrb[0].mxu0
    %397 = vmatprep.mubr.f32.mxu0 0.0
    %398 = vmatmul.mubr.f32.gmra.mrb[0].mxu0 %v312
    %v399 = vpop.f32.mrb[0].mxu0
    %v400 = vadd.f32 0.0, %v399
    %v401 = vpop.f32.mrb[0].mxu0
    %402 = vmatprep.mubr.f32.mxu0 0.0
    %403 = vmatmul.mubr.f32.gmra.mrb[0].mxu0 %v315
    %v404 = vpop.f32.mrb[0].mxu0
    %v405 = vadd.f32 0.0, %v404
    %v406 = vpop.f32.mrb[0].mxu0
    %407 = vmatprep.mubr.f32.mxu0 0.0
    %408 = vmatmul.mubr.f32.gmra.mrb[0].mxu0 %v318
    %v409 = vpop.f32.mrb[0].mxu0
    %v410 = vadd.f32 0.0, %v409
    %v411 = vpop.f32.mrb[0].mxu0
    %412 = vmatprep.mubr.f32.mxu0 0.0
    %413 = vmatmul.mubr.f32.gmra.mrb[0].mxu0 %v321
    %v414 = vpop.f32.mrb[0].mxu0
    %v415 = vadd.f32 0.0, %v414
    %v416 = vpop.f32.mrb[0].mxu0
    %417 = vdwg.mxu0
    %v418 = vmul.f32 %v65, 0.95
    %v419 = vmul.f32 %v66, 0.95
    %v420 = vmul.f32 %v390, 0.1
    %v421 = vmul.f32 %v395, 0.1
    %v422 = vadd.f32 %v418, %v420
    %v423 = vadd.f32 %v419, %v421
    %v424 = vmul.f32 %v67, 0.95
    %v425 = vmul.f32 %v68, 0.95
    %v426 = vmul.f32 %v69, 0.95
    %v427 = vmul.f32 %v70, 0.95
    %v428 = vmul.f32 %v400, 0.1
    %v429 = vmul.f32 %v405, 0.1
    %v430 = vmul.f32 %v410, 0.1
    %v431 = vmul.f32 %v415, 0.1
    %v432 = vadd.f32 %v424, %v428
    %v433 = vadd.f32 %v425, %v429
    %v434 = vadd.f32 %v426, %v430
    %v435 = vadd.f32 %v427, %v431
    %v436 = vmul.f32 %v422, %v422
    %v437 = vmul.f32 %v423, %v423
    %v438 = vsel %vm81, %v436, 0.0
    %v439 = vsel %vm81, %v437, 0.0
    %v440 = vadd.f32 %v438, %v439
    %v441 = vrot.slane %v440, 4
    %v442 = vadd.f32 %v440, %v441
    %v443 = vrot.slane %v442, 2
    %v444 = vadd.f32 %v442, %v443
    %v445 = vrot.slane %v444, 1
    %v446 = vadd.f32 %v444, %v445
    %v447 = vmul.f32 %v432, %v432
    %v448 = vmul.f32 %v433, %v433
    %v449 = vmul.f32 %v434, %v434
    %v450 = vmul.f32 %v435, %v435
    %v451 = vsel %vm81, %v447, 0.0
    %v452 = vsel %vm81, %v448, 0.0
    %v453 = vadd.f32 %v451, %v452
    %v454 = vsel %vm81, %v449, 0.0
    %v455 = vadd.f32 %v453, %v454
    %v456 = vsel %vm81, %v450, 0.0
    %v457 = vadd.f32 %v455, %v456
    %v458 = vrot.slane %v457, 4
    %v459 = vadd.f32 %v457, %v458
    %v460 = vrot.slane %v459, 2
    %v461 = vadd.f32 %v459, %v460
    %v462 = vrot.slane %v461, 1
    %v463 = vadd.f32 %v461, %v462
    %vm464 = vcmask 253952
    %v465 = vsel %vm464, %v446, 0.0
    %466 = vadd.xlane.f32.xlu0 %v465
    %v467 = vpop.xlane.xlu0 %466
    %v468 = vrot.slane %v467, 4
    %v469 = vadd.f32 %v467, %v468
    %v470 = vrot.slane %v469, 2
    %v471 = vadd.f32 %v469, %v470
    %v472 = vrot.slane %v471, 1
    %v473 = vadd.f32 %v471, %v472
    %s474 = vtos %v473
    %p475 = scmp.gt.f32.partialorder %s474, 4.0
    %v476 = vmax.f32 %v446, 1e-24
    %v477 = vrsqrt.pop %v476
    %v478 = vmul.f32 %v422, %v477
    %v479 = vmul.f32 %v423, %v477
    %v480 = vmax.f32 %v463, 1e-24
    %v481 = vrsqrt.pop %v480
    %v482 = vmul.f32 %v432, %v481
    %v483 = vmul.f32 %v433, %v481
    %v484 = vmul.f32 %v434, %v481
    %v485 = vmul.f32 %v435, %v481
    %s486 = scalar_select %p475, 1, 0
    %v487 = vstv %s486
    %vm488 = vcmp.eq.s32.totalorder %v487, 1
    %v489 = vsel %vm488, %v478, %v422
    %v490 = vsel %vm488, %v479, %v423
    %v491 = vsel %vm488, %v482, %v432
    %v492 = vsel %vm488, %v483, %v433
    %v493 = vsel %vm488, %v484, %v434
    %v494 = vsel %vm488, %v485, %v435
    %s495 = scalar_lea.vmem %s0, 8
    %v496 = vld [vmem:[%s495] sm:$0xff]
    %s497 = scalar_lea.vmem [#allocation3], 8
    %v498 = vld [vmem:[%s497] sm:$0xff]
    %v499 = vmul.f32 %v496, %v496
    %v500 = vsel %vm74, %v499, 0.0
    %501 = vadd.xlane.f32.xlu0 %v500
    %v502 = vpop.xlane.xlu0 %501
    %v503 = vrsqrt.pop %v502
    %v504 = vmul.f32 %v489, %v489
    %v505 = vmul.f32 %v490, %v490
    %v506 = vsel %vm81, %v504, 0.0
    %v507 = vsel %vm81, %v505, 0.0
    %v508 = vadd.f32 %v506, %v507
    %v509 = vrot.slane %v508, 4
    %v510 = vadd.f32 %v508, %v509
    %v511 = vrot.slane %v510, 2
    %v512 = vadd.f32 %v510, %v511
    %v513 = vrot.slane %v512, 1
    %v514 = vadd.f32 %v512, %v513
    %v515 = vrsqrt.pop %v514
    %v517 = vsel %vm74, %v496, 0
    %519 = vmatprep.subr.mxu0 0.0
    %520 = vmatpush1.msra.mxu0 %v489
    %521 = vmatprep.subr.mxu0 0.0
    %522 = vmatpush1.msra.mxu0 %v490
    %523 = vmatprep.subr.mxu0 0.0
    %524 = vmatpush1.msra.mxu0 0.0
    %525 = vmatprep.subr.mxu0 0.0
    %526 = vmatpush1.msra.mxu0 0.0
    %527 = vmatprep.subr.mxu0 0.0
    %528 = vmatpush1.msra.mxu0 0.0
    %529 = vmatprep.subr.mxu0 0.0
    %530 = vmatpush1.msra.mxu0 0.0
    %531 = vmatprep.subr.mxu0 0.0
    %532 = vmatpush1.msra.mxu0 0.0
    %533 = vmatprep.subr.mxu0 0.0
    %534 = vmatpush1.msra.mxu0 0.0
    %535 = vmatprep.subr.mxu0 0.0
    %536 = vmatpush1.msra.mxu0 0.0
    %537 = vmatprep.subr.mxu0 0.0
    %538 = vmatpush1.msra.mxu0 0.0
    %539 = vmatprep.subr.mxu0 0.0
    %540 = vmatpush1.msra.mxu0 0.0
    %541 = vmatprep.subr.mxu0 0.0
    %542 = vmatpush1.msra.mxu0 0.0
    %543 = vmatprep.subr.mxu0 0.0
    %544 = vmatpush1.msra.mxu0 0.0
    %545 = vmatprep.subr.mxu0 0.0
    %546 = vmatpush1.msra.mxu0 0.0
    %547 = vmatprep.subr.mxu0 0.0
    %548 = vmatpush1.msra.mxu0 0.0
    %549 = vmatprep.subr.mxu0 0.0
    %550 = vmatpush1.msra.mxu0 0.0
    %551 = vmatprep.subr.mxu0 0.0
    %552 = vmatpush1.msra.mxu0 0.0
    %553 = vmatprep.subr.mxu0 0.0
    %554 = vmatpush1.msra.mxu0 0.0
    %555 = vmatprep.subr.mxu0 0.0
    %556 = vmatpush1.msra.mxu0 0.0
    %557 = vmatprep.subr.mxu0 0.0
    %558 = vmatpush1.msra.mxu0 0.0
    %559 = vmatprep.subr.mxu0 0.0
    %560 = vmatpush1.msra.mxu0 0.0
    %561 = vmatprep.subr.mxu0 0.0
    %562 = vmatpush1.msra.mxu0 0.0
    %563 = vmatprep.subr.mxu0 0.0
    %564 = vmatpush1.msra.mxu0 0.0
    %565 = vmatprep.subr.mxu0 0.0
    %566 = vmatpush1.msra.mxu0 0.0
    %567 = vmatprep.subr.mxu0 0.0
    %568 = vmatpush1.msra.mxu0 0.0
    %569 = vmatprep.subr.mxu0 0.0
    %570 = vmatpush1.msra.mxu0 0.0
    %571 = vmatprep.subr.mxu0 0.0
    %572 = vmatpush1.msra.mxu0 0.0
    %573 = vmatprep.subr.mxu0 0.0
    %574 = vmatpush1.msra.mxu0 0.0
    %575 = vmatprep.subr.mxu0 0.0
    %576 = vmatpush1.msra.mxu0 0.0
    %577 = vmatprep.subr.mxu0 0.0
    %578 = vmatpush1.msra.mxu0 0.0
    %579 = vmatprep.subr.mxu0 0.0
    %580 = vmatpush1.msra.mxu0 0.0
    %581 = vmatprep.subr.mxu0 0.0
    %582 = vmatpush1.msra.mxu0 0.0
    %583 = vmatprep.mubr.f32.mxu0 0.0
    %584 = vmatmul.mubr.f32.gmra.mrb[0].mxu0 %v517
    %v585 = vpop.f32.mrb[0].mxu0
    %v586 = vadd.f32 0.0, %v585
    %v587 = vpop.f32.mrb[0].mxu0
    %588 = vdwg.mxu0
    %v589 = vmul.f32 %v503, %v515
    %v590 = vmul.f32 %v586, %v589
    %v591 = vsel %vm81, %v590, -inf
    %592 = vmax.xlane.f32.xlu0 %v591
    %v593 = vpop.xlane.xlu0 %592
    %v594 = vsub.f32 %v590, %v593
    %v595 = vmul.f32 %v594, 1.442695
    %v596 = vpow.pop %v595
    %v597 = vsel %vm81, %v596, 0.0
    %598 = vadd.xlane.f32.xlu0 %v597
    %v599 = vpop.xlane.xlu0 %598
    %v600 = vrcp.pop %v599
    %v601 = vmul.f32 %v596, %v600
    %v602 = vmul.f32 %v594, 2.0
    %v603 = vmul.f32 %v602, 1.442695
    %v604 = vpow.pop %v603
    %v605 = vsel %vm81, %v604, 0.0
    %606 = vadd.xlane.f32.xlu0 %v605
    %v607 = vpop.xlane.xlu0 %606
    %v608 = vrcp.pop %v607
    %v609 = vmul.f32 %v604, %v608
    %v611 = vsel %vm81, %v601, 0
    %v614 = vsel %vm81, %v491, 0
    %v617 = vsel %vm81, %v492, 0
    %v620 = vsel %vm81, %v493, 0
    %v623 = vsel %vm81, %v494, 0
    %625 = vmatprep.subr.mxu0 0.0
    %626 = vmatpush1.xpose.msra.mxu0 %v614
    %627 = vmatprep.subr.mxu0 0.0
    %628 = vmatpush1.xpose.msra.mxu0 %v617
    %629 = vmatprep.subr.mxu0 0.0
    %630 = vmatpush1.xpose.msra.mxu0 %v620
    %631 = vmatprep.subr.mxu0 0.0
    %632 = vmatpush1.xpose.msra.mxu0 %v623
    %633 = vmatprep.subr.mxu0 0.0
    %634 = vmatpush1.xpose.msra.mxu0 0.0
    %635 = vmatprep.subr.mxu0 0.0
    %636 = vmatpush1.xpose.msra.mxu0 0.0
    %637 = vmatprep.subr.mxu0 0.0
    %638 = vmatpush1.xpose.msra.mxu0 0.0
    %639 = vmatprep.subr.mxu0 0.0
    %640 = vmatpush1.xpose.msra.mxu0 0.0
    %641 = vmatprep.subr.mxu0 0.0
    %642 = vmatpush1.xpose.msra.mxu0 0.0
    %643 = vmatprep.subr.mxu0 0.0
    %644 = vmatpush1.xpose.msra.mxu0 0.0
    %645 = vmatprep.subr.mxu0 0.0
    %646 = vmatpush1.xpose.msra.mxu0 0.0
    %647 = vmatprep.subr.mxu0 0.0
    %648 = vmatpush1.xpose.msra.mxu0 0.0
    %649 = vmatprep.subr.mxu0 0.0
    %650 = vmatpush1.xpose.msra.mxu0 0.0
    %651 = vmatprep.subr.mxu0 0.0
    %652 = vmatpush1.xpose.msra.mxu0 0.0
    %653 = vmatprep.subr.mxu0 0.0
    %654 = vmatpush1.xpose.msra.mxu0 0.0
    %655 = vmatprep.subr.mxu0 0.0
    %656 = vmatpush1.xpose.msra.mxu0 0.0
    %657 = vmatprep.subr.mxu0 0.0
    %658 = vmatpush1.xpose.msra.mxu0 0.0
    %659 = vmatprep.subr.mxu0 0.0
    %660 = vmatpush1.xpose.msra.mxu0 0.0
    %661 = vmatprep.subr.mxu0 0.0
    %662 = vmatpush1.xpose.msra.mxu0 0.0
    %663 = vmatprep.subr.mxu0 0.0
    %664 = vmatpush1.xpose.msra.mxu0 0.0
    %665 = vmatprep.subr.mxu0 0.0
    %666 = vmatpush1.xpose.msra.mxu0 0.0
    %667 = vmatprep.subr.mxu0 0.0
    %668 = vmatpush1.xpose.msra.mxu0 0.0
    %669 = vmatprep.subr.mxu0 0.0
    %670 = vmatpush1.xpose.msra.mxu0 0.0
    %671 = vmatprep.subr.mxu0 0.0
    %672 = vmatpush1.xpose.msra.mxu0 0.0
    %673 = vmatprep.subr.mxu0 0.0
    %674 = vmatpush1.xpose.msra.mxu0 0.0
    %675 = vmatprep.subr.mxu0 0.0
    %676 = vmatpush1.xpose.msra.mxu0 0.0
    %677 = vmatprep.subr.mxu0 0.0
    %678 = vmatpush1.xpose.msra.mxu0 0.0
    %679 = vmatprep.subr.mxu0 0.0
    %680 = vmatpush1.xpose.msra.mxu0 0.0
    %681 = vmatprep.subr.mxu0 0.0
    %682 = vmatpush1.xpose.msra.mxu0 0.0
    %683 = vmatprep.subr.mxu0 0.0
    %684 = vmatpush1.xpose.msra.mxu0 0.0
    %685 = vmatprep.subr.mxu0 0.0
    %686 = vmatpush1.xpose.msra.mxu0 0.0
    %687 = vmatprep.subr.mxu0 0.0
    %688 = vmatpush1.xpose.msra.mxu0 0.0
    %689 = vmatprep.mubr.f32.mxu0 0.0
    %690 = vmatmul.mubr.f32.gmra.mrb[0].mxu0 %v611
    %v691 = vpop.f32.mrb[0].mxu0
    %v692 = vadd.f32 0.0, %v691
    %v693 = vpop.f32.mrb[0].mxu0
    %694 = vdwg.mxu0
    %s695 = scalar_lea.vmem [#allocation2], 8
    %696 = vst.msk [vmem:[%s695] sm:$0xff] %vm81, %v692
    %697 = vxpose.xlu0.b32.start [1/16] %v498, 128
    %698 = vxpose.xlu0.b32.cont [2/16] 0.0, 128
    %699 = vxpose.xlu0.b32.cont [3/16] 0.0, 128
    %700 = vxpose.xlu0.b32.cont [4/16] 0.0, 128
    %701 = vxpose.xlu0.b32.cont [5/16] 0.0, 128
    %702 = vxpose.xlu0.b32.cont [6/16] 0.0, 128
    %703 = vxpose.xlu0.b32.cont [7/16] 0.0, 128
    %704 = vxpose.xlu0.b32.cont [8/16] 0.0, 128
    %705 = vxpose.xlu0.b32.cont [9/16] 0.0, 128
    %706 = vxpose.xlu0.b32.cont [10/16] 0.0, 128
    %707 = vxpose.xlu0.b32.cont [11/16] 0.0, 128
    %708 = vxpose.xlu0.b32.cont [12/16] 0.0, 128
    %709 = vxpose.xlu0.b32.cont [13/16] 0.0, 128
    %710 = vxpose.xlu0.b32.cont [14/16] 0.0, 128
    %711 = vxpose.xlu0.b32.cont [15/16] 0.0, 128
    %712 = vxpose.xlu0.b32.end [16/16] 0.0, 128
    %v713 = vpop.trf.xlu0
    %v714 = vpop.trf.xlu0
    %v715 = vpop.trf.xlu0
    %v716 = vpop.trf.xlu0
    %v717 = vpop.trf.xlu0
    %v718 = vpop.trf.xlu0
    %v719 = vpop.trf.xlu0
    %v720 = vpop.trf.xlu0
    %v721 = vpop.trf.xlu0
    %v722 = vpop.trf.xlu0
    %v723 = vpop.trf.xlu0
    %v724 = vpop.trf.xlu0
    %v725 = vpop.trf.xlu0
    %v726 = vpop.trf.xlu0
    %v727 = vpop.trf.xlu0
    %v728 = vpop.trf.xlu0
    %v730 = vsel %vm304, %v713, 0
    %v733 = vsel %vm304, %v714, 0
    %v736 = vsel %vm304, %v715, 0
    %v739 = vsel %vm304, %v716, 0
    %v742 = vsel %vm304, %v717, 0
    %v745 = vsel %vm304, %v718, 0
    %747 = vmatprep.subr.mxu0 0.0
    %748 = vmatpush1.msra.mxu0 %v609
    %749 = vmatprep.subr.mxu0 0.0
    %750 = vmatpush1.msra.mxu0 0.0
    %751 = vmatprep.subr.mxu0 0.0
    %752 = vmatpush1.msra.mxu0 0.0
    %753 = vmatprep.subr.mxu0 0.0
    %754 = vmatpush1.msra.mxu0 0.0
    %755 = vmatprep.subr.mxu0 0.0
    %756 = vmatpush1.msra.mxu0 0.0
    %757 = vmatprep.subr.mxu0 0.0
    %758 = vmatpush1.msra.mxu0 0.0
    %759 = vmatprep.subr.mxu0 0.0
    %760 = vmatpush1.msra.mxu0 0.0
    %761 = vmatprep.subr.mxu0 0.0
    %762 = vmatpush1.msra.mxu0 0.0
    %763 = vmatprep.subr.mxu0 0.0
    %764 = vmatpush1.msra.mxu0 0.0
    %765 = vmatprep.subr.mxu0 0.0
    %766 = vmatpush1.msra.mxu0 0.0
    %767 = vmatprep.subr.mxu0 0.0
    %768 = vmatpush1.msra.mxu0 0.0
    %769 = vmatprep.subr.mxu0 0.0
    %770 = vmatpush1.msra.mxu0 0.0
    %771 = vmatprep.subr.mxu0 0.0
    %772 = vmatpush1.msra.mxu0 0.0
    %773 = vmatprep.subr.mxu0 0.0
    %774 = vmatpush1.msra.mxu0 0.0
    %775 = vmatprep.subr.mxu0 0.0
    %776 = vmatpush1.msra.mxu0 0.0
    %777 = vmatprep.subr.mxu0 0.0
    %778 = vmatpush1.msra.mxu0 0.0
    %779 = vmatprep.subr.mxu0 0.0
    %780 = vmatpush1.msra.mxu0 0.0
    %781 = vmatprep.subr.mxu0 0.0
    %782 = vmatpush1.msra.mxu0 0.0
    %783 = vmatprep.subr.mxu0 0.0
    %784 = vmatpush1.msra.mxu0 0.0
    %785 = vmatprep.subr.mxu0 0.0
    %786 = vmatpush1.msra.mxu0 0.0
    %787 = vmatprep.subr.mxu0 0.0
    %788 = vmatpush1.msra.mxu0 0.0
    %789 = vmatprep.subr.mxu0 0.0
    %790 = vmatpush1.msra.mxu0 0.0
    %791 = vmatprep.subr.mxu0 0.0
    %792 = vmatpush1.msra.mxu0 0.0
    %793 = vmatprep.subr.mxu0 0.0
    %794 = vmatpush1.msra.mxu0 0.0
    %795 = vmatprep.subr.mxu0 0.0
    %796 = vmatpush1.msra.mxu0 0.0
    %797 = vmatprep.subr.mxu0 0.0
    %798 = vmatpush1.msra.mxu0 0.0
    %799 = vmatprep.subr.mxu0 0.0
    %800 = vmatpush1.msra.mxu0 0.0
    %801 = vmatprep.subr.mxu0 0.0
    %802 = vmatpush1.msra.mxu0 0.0
    %803 = vmatprep.subr.mxu0 0.0
    %804 = vmatpush1.msra.mxu0 0.0
    %805 = vmatprep.subr.mxu0 0.0
    %806 = vmatpush1.msra.mxu0 0.0
    %807 = vmatprep.subr.mxu0 0.0
    %808 = vmatpush1.msra.mxu0 0.0
    %809 = vmatprep.subr.mxu0 0.0
    %810 = vmatpush1.msra.mxu0 0.0
    %811 = vmatprep.mubr.f32.mxu0 0.0
    %812 = vmatmul.mubr.f32.gmra.mrb[0].mxu0 %v730
    %v813 = vpop.f32.mrb[0].mxu0
    %v814 = vadd.f32 0.0, %v813
    %v815 = vpop.f32.mrb[0].mxu0
    %816 = vmatprep.mubr.f32.mxu0 0.0
    %817 = vmatmul.mubr.f32.gmra.mrb[0].mxu0 %v733
    %v818 = vpop.f32.mrb[0].mxu0
    %v819 = vadd.f32 0.0, %v818
    %v820 = vpop.f32.mrb[0].mxu0
    %821 = vmatprep.mubr.f32.mxu0 0.0
    %822 = vmatmul.mubr.f32.gmra.mrb[0].mxu0 %v736
    %v823 = vpop.f32.mrb[0].mxu0
    %v824 = vadd.f32 0.0, %v823
    %v825 = vpop.f32.mrb[0].mxu0
    %826 = vmatprep.mubr.f32.mxu0 0.0
    %827 = vmatmul.mubr.f32.gmra.mrb[0].mxu0 %v739
    %v828 = vpop.f32.mrb[0].mxu0
    %v829 = vadd.f32 0.0, %v828
    %v830 = vpop.f32.mrb[0].mxu0
    %831 = vmatprep.mubr.f32.mxu0 0.0
    %832 = vmatmul.mubr.f32.gmra.mrb[0].mxu0 %v742
    %v833 = vpop.f32.mrb[0].mxu0
    %v834 = vadd.f32 0.0, %v833
    %v835 = vpop.f32.mrb[0].mxu0
    %836 = vmatprep.mubr.f32.mxu0 0.0
    %837 = vmatmul.mubr.f32.gmra.mrb[0].mxu0 %v745
    %v838 = vpop.f32.mrb[0].mxu0
    %v839 = vadd.f32 0.0, %v838
    %v840 = vpop.f32.mrb[0].mxu0
    %841 = vdwg.mxu0
    %v842 = vmul.f32 %v489, 0.95
    %v843 = vmul.f32 %v490, 0.95
    %v844 = vmul.f32 %v814, 0.1
    %v845 = vmul.f32 %v819, 0.1
    %v846 = vadd.f32 %v842, %v844
    %v847 = vadd.f32 %v843, %v845
    %v848 = vmul.f32 %v491, 0.95
    %v849 = vmul.f32 %v492, 0.95
    %v850 = vmul.f32 %v493, 0.95
    %v851 = vmul.f32 %v494, 0.95
    %v852 = vmul.f32 %v824, 0.1
    %v853 = vmul.f32 %v829, 0.1
    %v854 = vmul.f32 %v834, 0.1
    %v855 = vmul.f32 %v839, 0.1
    %v856 = vadd.f32 %v848, %v852
    %v857 = vadd.f32 %v849, %v853
    %v858 = vadd.f32 %v850, %v854
    %v859 = vadd.f32 %v851, %v855
    %v860 = vmul.f32 %v846, %v846
    %v861 = vmul.f32 %v847, %v847
    %v862 = vsel %vm81, %v860, 0.0
    %v863 = vsel %vm81, %v861, 0.0
    %v864 = vadd.f32 %v862, %v863
    %v865 = vrot.slane %v864, 4
    %v866 = vadd.f32 %v864, %v865
    %v867 = vrot.slane %v866, 2
    %v868 = vadd.f32 %v866, %v867
    %v869 = vrot.slane %v868, 1
    %v870 = vadd.f32 %v868, %v869
    %v871 = vmul.f32 %v856, %v856
    %v872 = vmul.f32 %v857, %v857
    %v873 = vmul.f32 %v858, %v858
    %v874 = vmul.f32 %v859, %v859
    %v875 = vsel %vm81, %v871, 0.0
    %v876 = vsel %vm81, %v872, 0.0
    %v877 = vadd.f32 %v875, %v876
    %v878 = vsel %vm81, %v873, 0.0
    %v879 = vadd.f32 %v877, %v878
    %v880 = vsel %vm81, %v874, 0.0
    %v881 = vadd.f32 %v879, %v880
    %v882 = vrot.slane %v881, 4
    %v883 = vadd.f32 %v881, %v882
    %v884 = vrot.slane %v883, 2
    %v885 = vadd.f32 %v883, %v884
    %v886 = vrot.slane %v885, 1
    %v887 = vadd.f32 %v885, %v886
    %v888 = vsel %vm464, %v870, 0.0
    %889 = vadd.xlane.f32.xlu0 %v888
    %v890 = vpop.xlane.xlu0 %889
    %v891 = vrot.slane %v890, 4
    %v892 = vadd.f32 %v890, %v891
    %v893 = vrot.slane %v892, 2
    %v894 = vadd.f32 %v892, %v893
    %v895 = vrot.slane %v894, 1
    %v896 = vadd.f32 %v894, %v895
    %s897 = vtos %v896
    %p898 = scmp.gt.f32.partialorder %s897, 4.0
    %v899 = vmax.f32 %v870, 1e-24
    %v900 = vrsqrt.pop %v899
    %v901 = vmul.f32 %v846, %v900
    %v902 = vmul.f32 %v847, %v900
    %v903 = vmax.f32 %v887, 1e-24
    %v904 = vrsqrt.pop %v903
    %v905 = vmul.f32 %v856, %v904
    %v906 = vmul.f32 %v857, %v904
    %v907 = vmul.f32 %v858, %v904
    %v908 = vmul.f32 %v859, %v904
    %s909 = scalar_select %p898, 1, 0
    %v910 = vstv %s909
    %vm911 = vcmp.eq.s32.totalorder %v910, 1
    %v912 = vsel %vm911, %v901, %v846
    %v913 = vsel %vm911, %v902, %v847
    %v914 = vsel %vm911, %v905, %v856
    %v915 = vsel %vm911, %v906, %v857
    %v916 = vsel %vm911, %v907, %v858
    %v917 = vsel %vm911, %v908, %v859
    %918 = vst.msk [vmem:[#allocation9] sm:$0xff] %vm81, %v912
    %919 = vst.msk [vmem:[#allocation9 + $0x8] sm:$0xff] %vm81, %v913
    %920 = vst.msk [vmem:[#allocation11] sm:$0xff] %vm81, %v914
    %921 = vst.msk [vmem:[#allocation11 + $0x8] sm:$0xff] %vm81, %v915
    %922 = vst.msk [vmem:[#allocation11 + $0x10] sm:$0xff] %vm81, %v916
    %923 = vst.msk [vmem:[#allocation11 + $0x18] sm:$0xff] %vm81, %v917
    %v924 = vld [vmem:[%s5] sm:$0xff]
    %v925 = vld [vmem:[%s5 + $0x8] sm:$0xff]
    %v926 = vld [vmem:[%s5 + $0x10] sm:$0xff]
    %v927 = vld [vmem:[%s5 + $0x18] sm:$0xff]
    %v928 = vld [vmem:[%s5 + $0x20] sm:$0xff]
    %v929 = vld [vmem:[%s5 + $0x28] sm:$0xff]
    %v930 = vld [vmem:[%s5 + $0x30] sm:$0xff]
    %v931 = vld [vmem:[%s5 + $0x38] sm:$0xff]
    %v932 = vld [vmem:[%s1] sm:$0xff]
    %v933 = vld [vmem:[%s1 + $0x8] sm:$0xff]
    %v934 = vld [vmem:[#allocation2] sm:$0xff]
    %v935 = vld [vmem:[#allocation2 + $0x8] sm:$0xff]
    %v937 = vsel %vm81, %v934, 0
    %v940 = vsel %vm81, %v935, 0
    %942 = vmatprep.subr.mxu0 0.0
    %943 = vmatpush1.msra.mxu0 %v928
    %944 = vmatprep.subr.mxu0 0.0
    %945 = vmatpush1.msra.mxu0 %v929
    %946 = vmatprep.subr.mxu0 0.0
    %947 = vmatpush1.msra.mxu0 %v930
    %948 = vmatprep.subr.mxu0 0.0
    %949 = vmatpush1.msra.mxu0 %v931
    %950 = vmatprep.subr.mxu0 0.0
    %951 = vmatpush1.msra.mxu0 0.0
    %952 = vmatprep.subr.mxu0 0.0
    %953 = vmatpush1.msra.mxu0 0.0
    %954 = vmatprep.subr.mxu0 0.0
    %955 = vmatpush1.msra.mxu0 0.0
    %956 = vmatprep.subr.mxu0 0.0
    %957 = vmatpush1.msra.mxu0 0.0
    %958 = vmatprep.subr.mxu0 0.0
    %959 = vmatpush1.msra.mxu0 0.0
    %960 = vmatprep.subr.mxu0 0.0
    %961 = vmatpush1.msra.mxu0 0.0
    %962 = vmatprep.subr.mxu0 0.0
    %963 = vmatpush1.msra.mxu0 0.0
    %964 = vmatprep.subr.mxu0 0.0
    %965 = vmatpush1.msra.mxu0 0.0
    %966 = vmatprep.subr.mxu0 0.0
    %967 = vmatpush1.msra.mxu0 0.0
    %968 = vmatprep.subr.mxu0 0.0
    %969 = vmatpush1.msra.mxu0 0.0
    %970 = vmatprep.subr.mxu0 0.0
    %971 = vmatpush1.msra.mxu0 0.0
    %972 = vmatprep.subr.mxu0 0.0
    %973 = vmatpush1.msra.mxu0 0.0
    %974 = vmatprep.subr.mxu0 0.0
    %975 = vmatpush1.msra.mxu0 0.0
    %976 = vmatprep.subr.mxu0 0.0
    %977 = vmatpush1.msra.mxu0 0.0
    %978 = vmatprep.subr.mxu0 0.0
    %979 = vmatpush1.msra.mxu0 0.0
    %980 = vmatprep.subr.mxu0 0.0
    %981 = vmatpush1.msra.mxu0 0.0
    %982 = vmatprep.subr.mxu0 0.0
    %983 = vmatpush1.msra.mxu0 0.0
    %984 = vmatprep.subr.mxu0 0.0
    %985 = vmatpush1.msra.mxu0 0.0
    %986 = vmatprep.subr.mxu0 0.0
    %987 = vmatpush1.msra.mxu0 0.0
    %988 = vmatprep.subr.mxu0 0.0
    %989 = vmatpush1.msra.mxu0 0.0
    %990 = vmatprep.subr.mxu0 0.0
    %991 = vmatpush1.msra.mxu0 0.0
    %992 = vmatprep.subr.mxu0 0.0
    %993 = vmatpush1.msra.mxu0 0.0
    %994 = vmatprep.subr.mxu0 0.0
    %995 = vmatpush1.msra.mxu0 0.0
    %996 = vmatprep.subr.mxu0 0.0
    %997 = vmatpush1.msra.mxu0 0.0
    %998 = vmatprep.subr.mxu0 0.0
    %999 = vmatpush1.msra.mxu0 0.0
    %1000 = vmatprep.subr.mxu0 0.0
    %1001 = vmatpush1.msra.mxu0 0.0
    %1002 = vmatprep.subr.mxu0 0.0
    %1003 = vmatpush1.msra.mxu0 0.0
    %1004 = vmatprep.subr.mxu0 0.0
    %1005 = vmatpush1.msra.mxu0 0.0
    %1006 = vmatprep.mubr.f32.mxu0 0.0
    %1007 = vmatmul.mubr.f32.gmra.mrb[0].mxu0 %v937
    %v1008 = vpop.f32.mrb[0].mxu0
    %v1009 = vadd.f32 0.0, %v1008
    %v1010 = vpop.f32.mrb[0].mxu0
    %1011 = vmatprep.mubr.f32.mxu0 0.0
    %1012 = vmatmul.mubr.f32.gmra.mrb[0].mxu0 %v940
    %v1013 = vpop.f32.mrb[0].mxu0
    %v1014 = vadd.f32 0.0, %v1013
    %v1015 = vpop.f32.mrb[0].mxu0
    %1016 = vdwg.mxu0
    %v1018 = vsel %vm81, %v932, 0
    %v1021 = vsel %vm81, %v933, 0
    %1023 = vmatprep.subr.mxu0 0.0
    %1024 = vmatpush1.msra.mxu0 %v924
    %1025 = vmatprep.subr.mxu0 0.0
    %1026 = vmatpush1.msra.mxu0 %v925
    %1027 = vmatprep.subr.mxu0 0.0
    %1028 = vmatpush1.msra.mxu0 %v926
    %1029 = vmatprep.subr.mxu0 0.0
    %1030 = vmatpush1.msra.mxu0 %v927
    %1031 = vmatprep.subr.mxu0 0.0
    %1032 = vmatpush1.msra.mxu0 0.0
    %1033 = vmatprep.subr.mxu0 0.0
    %1034 = vmatpush1.msra.mxu0 0.0
    %1035 = vmatprep.subr.mxu0 0.0
    %1036 = vmatpush1.msra.mxu0 0.0
    %1037 = vmatprep.subr.mxu0 0.0
    %1038 = vmatpush1.msra.mxu0 0.0
    %1039 = vmatprep.subr.mxu0 0.0
    %1040 = vmatpush1.msra.mxu0 0.0
    %1041 = vmatprep.subr.mxu0 0.0
    %1042 = vmatpush1.msra.mxu0 0.0
    %1043 = vmatprep.subr.mxu0 0.0
    %1044 = vmatpush1.msra.mxu0 0.0
    %1045 = vmatprep.subr.mxu0 0.0
    %1046 = vmatpush1.msra.mxu0 0.0
    %1047 = vmatprep.subr.mxu0 0.0
    %1048 = vmatpush1.msra.mxu0 0.0
    %1049 = vmatprep.subr.mxu0 0.0
    %1050 = vmatpush1.msra.mxu0 0.0
    %1051 = vmatprep.subr.mxu0 0.0
    %1052 = vmatpush1.msra.mxu0 0.0
    %1053 = vmatprep.subr.mxu0 0.0
    %1054 = vmatpush1.msra.mxu0 0.0
    %1055 = vmatprep.subr.mxu0 0.0
    %1056 = vmatpush1.msra.mxu0 0.0
    %1057 = vmatprep.subr.mxu0 0.0
    %1058 = vmatpush1.msra.mxu0 0.0
    %1059 = vmatprep.subr.mxu0 0.0
    %1060 = vmatpush1.msra.mxu0 0.0
    %1061 = vmatprep.subr.mxu0 0.0
    %1062 = vmatpush1.msra.mxu0 0.0
    %1063 = vmatprep.subr.mxu0 0.0
    %1064 = vmatpush1.msra.mxu0 0.0
    %1065 = vmatprep.subr.mxu0 0.0
    %1066 = vmatpush1.msra.mxu0 0.0
    %1067 = vmatprep.subr.mxu0 0.0
    %1068 = vmatpush1.msra.mxu0 0.0
    %1069 = vmatprep.subr.mxu0 0.0
    %1070 = vmatpush1.msra.mxu0 0.0
    %1071 = vmatprep.subr.mxu0 0.0
    %1072 = vmatpush1.msra.mxu0 0.0
    %1073 = vmatprep.subr.mxu0 0.0
    %1074 = vmatpush1.msra.mxu0 0.0
    %1075 = vmatprep.subr.mxu0 0.0
    %1076 = vmatpush1.msra.mxu0 0.0
    %1077 = vmatprep.subr.mxu0 0.0
    %1078 = vmatpush1.msra.mxu0 0.0
    %1079 = vmatprep.subr.mxu0 0.0
    %1080 = vmatpush1.msra.mxu0 0.0
    %1081 = vmatprep.subr.mxu0 0.0
    %1082 = vmatpush1.msra.mxu0 0.0
    %1083 = vmatprep.subr.mxu0 0.0
    %1084 = vmatpush1.msra.mxu0 0.0
    %1085 = vmatprep.subr.mxu0 0.0
    %1086 = vmatpush1.msra.mxu0 0.0
    %1087 = vmatprep.mubr.f32.mxu0 0.0
    %1088 = vmatmul.mubr.f32.gmra.mrb[0].mxu0 %v1018
    %v1089 = vpop.f32.mrb[0].mxu0
    %v1090 = vadd.f32 %v1009, %v1089
    %v1091 = vpop.f32.mrb[0].mxu0
    %1092 = vmatprep.mubr.f32.mxu0 0.0
    %1093 = vmatmul.mubr.f32.gmra.mrb[0].mxu0 %v1021
    %v1094 = vpop.f32.mrb[0].mxu0
    %v1095 = vadd.f32 %v1014, %v1094
    %v1096 = vpop.f32.mrb[0].mxu0
    %1097 = vdwg.mxu0
    %v1098 = vld [vmem:[%s6] sm:$0x1]
    %v1100 = vlaneseq
    %v1101 = vshrl.u32 %v1100, 7
    %v1102 = vsub.s32 0, %v1101
    %v1103 = vrot.slane %v1098, %v1102
    %v1105 = vadd.f32 %v1090, %v1103
    %v1106 = vadd.f32 %v1095, %v1103
    %v1107 = vmax.f32 %v1105, 0.0
    %v1108 = vmax.f32 %v1106, 0.0
    %v1109 = vld [vmem:[%s7] sm:$0xff]
    %v1110 = vld [vmem:[%s7 + $0x8] sm:$0xff]
    %v1111 = vld [vmem:[%s7 + $0x10] sm:$0xff]
    %v1112 = vld [vmem:[%s7 + $0x18] sm:$0xff]
    %v1113 = vld [vmem:[%s8] sm:$0x1]
    %v1115 = vlaneseq
    %v1116 = vshrl.u32 %v1115, 7
    %v1117 = vsub.s32 0, %v1116
    %v1118 = vrot.slane %v1113, %v1117
    %v1121 = vsel %vm81, %v1107, 0
    %v1124 = vsel %vm81, %v1108, 0
    %1126 = vmatprep.subr.mxu0 0.0
    %1127 = vmatpush1.msra.mxu0 %v1109
    %1128 = vmatprep.subr.mxu0 0.0
    %1129 = vmatpush1.msra.mxu0 %v1110
    %1130 = vmatprep.subr.mxu0 0.0
    %1131 = vmatpush1.msra.mxu0 %v1111
    %1132 = vmatprep.subr.mxu0 0.0
    %1133 = vmatpush1.msra.mxu0 %v1112
    %1134 = vmatprep.subr.mxu0 0.0
    %1135 = vmatpush1.msra.mxu0 0.0
    %1136 = vmatprep.subr.mxu0 0.0
    %1137 = vmatpush1.msra.mxu0 0.0
    %1138 = vmatprep.subr.mxu0 0.0
    %1139 = vmatpush1.msra.mxu0 0.0
    %1140 = vmatprep.subr.mxu0 0.0
    %1141 = vmatpush1.msra.mxu0 0.0
    %1142 = vmatprep.subr.mxu0 0.0
    %1143 = vmatpush1.msra.mxu0 0.0
    %1144 = vmatprep.subr.mxu0 0.0
    %1145 = vmatpush1.msra.mxu0 0.0
    %1146 = vmatprep.subr.mxu0 0.0
    %1147 = vmatpush1.msra.mxu0 0.0
    %1148 = vmatprep.subr.mxu0 0.0
    %1149 = vmatpush1.msra.mxu0 0.0
    %1150 = vmatprep.subr.mxu0 0.0
    %1151 = vmatpush1.msra.mxu0 0.0
    %1152 = vmatprep.subr.mxu0 0.0
    %1153 = vmatpush1.msra.mxu0 0.0
    %1154 = vmatprep.subr.mxu0 0.0
    %1155 = vmatpush1.msra.mxu0 0.0
    %1156 = vmatprep.subr.mxu0 0.0
    %1157 = vmatpush1.msra.mxu0 0.0
    %1158 = vmatprep.subr.mxu0 0.0
    %1159 = vmatpush1.msra.mxu0 0.0
    %1160 = vmatprep.subr.mxu0 0.0
    %1161 = vmatpush1.msra.mxu0 0.0
    %1162 = vmatprep.subr.mxu0 0.0
    %1163 = vmatpush1.msra.mxu0 0.0
    %1164 = vmatprep.subr.mxu0 0.0
    %1165 = vmatpush1.msra.mxu0 0.0
    %1166 = vmatprep.subr.mxu0 0.0
    %1167 = vmatpush1.msra.mxu0 0.0
    %1168 = vmatprep.subr.mxu0 0.0
    %1169 = vmatpush1.msra.mxu0 0.0
    %1170 = vmatprep.subr.mxu0 0.0
    %1171 = vmatpush1.msra.mxu0 0.0
    %1172 = vmatprep.subr.mxu0 0.0
    %1173 = vmatpush1.msra.mxu0 0.0
    %1174 = vmatprep.subr.mxu0 0.0
    %1175 = vmatpush1.msra.mxu0 0.0
    %1176 = vmatprep.subr.mxu0 0.0
    %1177 = vmatpush1.msra.mxu0 0.0
    %1178 = vmatprep.subr.mxu0 0.0
    %1179 = vmatpush1.msra.mxu0 0.0
    %1180 = vmatprep.subr.mxu0 0.0
    %1181 = vmatpush1.msra.mxu0 0.0
    %1182 = vmatprep.subr.mxu0 0.0
    %1183 = vmatpush1.msra.mxu0 0.0
    %1184 = vmatprep.subr.mxu0 0.0
    %1185 = vmatpush1.msra.mxu0 0.0
    %1186 = vmatprep.subr.mxu0 0.0
    %1187 = vmatpush1.msra.mxu0 0.0
    %1188 = vmatprep.subr.mxu0 0.0
    %1189 = vmatpush1.msra.mxu0 0.0
    %1190 = vmatprep.mubr.f32.mxu0 0.0
    %1191 = vmatmul.mubr.f32.gmra.mrb[0].mxu0 %v1121
    %v1192 = vpop.f32.mrb[0].mxu0
    %v1193 = vadd.f32 %v1118, %v1192
    %v1194 = vpop.f32.mrb[0].mxu0
    %1195 = vmatprep.mubr.f32.mxu0 0.0
    %1196 = vmatmul.mubr.f32.gmra.mrb[0].mxu0 %v1124
    %v1197 = vpop.f32.mrb[0].mxu0
    %v1198 = vadd.f32 %v1118, %v1197
    %v1199 = vpop.f32.mrb[0].mxu0
    %1200 = vdwg.mxu0
    %1201 = vst.msk [vmem:[#allocation8] sm:$0xff] %vm81, %v1193
    %1202 = vst.msk [vmem:[#allocation8 + $0x8] sm:$0xff] %vm81, %v1198
    // Predicated region
    $region46: #{tpu_custom_call.1} parent=1 // pred_check
      _
    $region47: #{tpu_custom_call.1} parent=1 // pred_check_branch
      %1204 = sbr.rel (0) target = $region49
    $region48: #{tpu_custom_call.1} parent=1 // pred_region
      %s1206 = ssub.s32 256, 256
      %1207 = vsyncadd [#allocation5], %s1206
      %s1208 = sshll.u32 [#allocation8], 4
      %s1209 = int_to_ptr.vmem [resolvable:$true] %s1208
      %1214 = dma.vmem_to_hbm [thread:$0]  %s1209, 256, %s9, [#allocation5], 128, 128, 8
    $region49: #{tpu_custom_call.1} parent=1 // pred_fallthru
      _
    // Predicated region
    $region50: #{tpu_custom_call.1} parent=1 // pred_check
      _
    $region51: #{tpu_custom_call.1} parent=1 // pred_check_branch
      %1216 = sbr.rel (0) target = $region53
    $region52: #{tpu_custom_call.1} parent=1 // pred_region
      %s1218 = ssub.s32 256, 256
      %1219 = vsyncadd [#allocation10], %s1218
      %s1220 = sshll.u32 [#allocation9], 4
      %s1221 = int_to_ptr.vmem [resolvable:$true] %s1220
      %1226 = dma.vmem_to_hbm [thread:$0]  %s1221, 256, %s10, [#allocation10], 128, 128, 8
    $region53: #{tpu_custom_call.1} parent=1 // pred_fallthru
      _
    // Predicated region
    $region54: #{tpu_custom_call.1} parent=1 // pred_check
      _
    $region55: #{tpu_custom_call.1} parent=1 // pred_check_branch
      %1228 = sbr.rel (0) target = $region57
    $region56: #{tpu_custom_call.1} parent=1 // pred_region
      %s1230 = ssub.s32 512, 512
      %1231 = vsyncadd [#allocation10], %s1230
      %s1232 = sshll.u32 [#allocation11], 4
      %s1233 = int_to_ptr.vmem [resolvable:$true] %s1232
      %1238 = dma.vmem_to_hbm [thread:$0]  %s1233, 512, %s11, [#allocation10], 128, 128, 8
    $region57: #{tpu_custom_call.1} parent=1 // pred_fallthru
      _
    // Predicated region
    $region58: #{tpu_custom_call.1} parent=1 // pred_check
      _
    $region59: #{tpu_custom_call.1} parent=1 // pred_check_branch
      %1240 = sbr.rel (0) target = $region61
    $region60: #{tpu_custom_call.1} parent=1 // pred_region
      %1241 = dma.done [#allocation5], 256
    $region61: #{tpu_custom_call.1} parent=1 // pred_fallthru
      _
    // Predicated region
    $region62: #{tpu_custom_call.1} parent=1 // pred_check
      _
    $region63: #{tpu_custom_call.1} parent=1 // pred_check_branch
      %1243 = sbr.rel (0) target = $region65
    $region64: #{tpu_custom_call.1} parent=1 // pred_region
      %1244 = dma.done [#allocation10], 256
    $region65: #{tpu_custom_call.1} parent=1 // pred_fallthru
      _
    // Predicated region
    $region66: #{tpu_custom_call.1} parent=1 // pred_check
      _
    $region67: #{tpu_custom_call.1} parent=1 // pred_check_branch
      %1246 = sbr.rel (0) target = $region69
    $region68: #{tpu_custom_call.1} parent=1 // pred_region
      %1247 = dma.done [#allocation10], 512
    $region69: #{tpu_custom_call.1} parent=1 // pred_fallthru
      _
    %1248 = vsyncpa [#allocation4], 1
    %1249 = vsyncpa [#allocation7], 1
    %1250 = vsyncpa [#allocation5], 1
    %1251 = vsyncpa [#allocation10], 1

</llo_original>
